<compile_context>
chip_gen: v5e
topology: v5e:2x2
jax: 0.10.0
libtpu: 0.0.40
codegen_flags: <defaults>
</compile_context>

<pallas_src>
import functools

import jax
import jax.numpy as jnp
from jax.experimental import pallas as pl
from jax.experimental.pallas import tpu as pltpu


def _dot_t(a, b):
    """(M, K) x (N, K) -> (M, N): contract last dims of both operands (no transpose)."""
    return jax.lax.dot_general(
        a, b,
        dimension_numbers=(((1,), (1,)), ((), ())),
        preferred_element_type=jnp.float32,
    )


def _layernorm(x, gamma, beta, eps=1e-6):
    """Row-wise LayerNorm (PyTorch semantics, biased variance, eps=1e-6). gamma/beta: (1, D)."""
    xf = x.astype(jnp.float32)
    mean = jnp.mean(xf, axis=-1, keepdims=True)
    xc = xf - mean
    var = jnp.mean(xc * xc, axis=-1, keepdims=True)
    return xc * jax.lax.rsqrt(var + eps) * gamma + beta


def _encoder_layer_kernel(
    x_ref,
    wq_ref, wk_ref, wv_ref, wfc_ref,
    ln_attn_g_ref, ln_attn_b_ref,
    w1_ref, b1_ref, w2_ref, b2_ref,
    ln_chunk_g_ref, ln_chunk_b_ref,
    ln_ffn_g_ref, ln_ffn_b_ref,
    o_ref,
    *, n_head, n_chunks,
):
    x = x_ref[0]                                    # (L, Dm), bf16 compute dtype
    cdt = x.dtype
    L, Dm = x.shape
    residual = x.astype(jnp.float32)

    # ---- Multi-head self-attention ------------------------------------------
    # 1/temperature is already folded into wq (wrapper). Heads are indexed on the
    # leading axis of (H, d, Dm) weights -> no lane-axis slicing; fc is accumulated
    # per head -> no lane-axis concat and no persistent ctx buffer.
    fc_acc = jnp.zeros((L, Dm), jnp.float32)
    for h in range(n_head):                         # static loop, H small
        q_h = _dot_t(x, wq_ref[h]).astype(cdt)      # (L, Dk)  f32 acc -> bf16 operand
        k_h = _dot_t(x, wk_ref[h]).astype(cdt)      # (L, Dk)
        v_h = _dot_t(x, wv_ref[h]).astype(cdt)      # (L, Dv)

        s = _dot_t(q_h, k_h)                        # (L, L) f32 scores (q pre-scaled)
        m = jnp.max(s, axis=-1, keepdims=True)
        e = jnp.exp(s - m)
        p = e * pl.reciprocal(jnp.sum(e, axis=-1, keepdims=True), approx=True)

        ctx_h = jnp.dot(p.astype(cdt), v_h, preferred_element_type=jnp.float32)  # (L, Dv)
        fc_acc = fc_acc + _dot_t(ctx_h.astype(cdt), wfc_ref[h])                  # (L, Dm)

    fc = jnp.maximum(fc_acc, 0.0)                   # relu(fc(context)); dropout -> identity
    attn_out = _layernorm(fc + residual, ln_attn_g_ref[...], ln_attn_b_ref[...])  # (L, Dm) f32
    attn_b = attn_out.astype(cdt)                   # bf16 MXU operand for w_1

    # ---- Position-wise FFN (MoE -> dense expert), final LN fused per chunk ----
    w1 = w1_ref[...]                                # (Dh, Dm) bf16
    b1 = b1_ref[...]                                # (1, Dh)  f32
    w2 = w2_ref[...]                                # (Dm, Dh) bf16
    b2 = b2_ref[...]                                # (1, Dm)  f32
    lng = ln_chunk_g_ref[...]                       # (n_chunks, Dh) f32
    lnb = ln_chunk_b_ref[...]
    g_out = ln_ffn_g_ref[...]                       # (1, Dm) f32
    b_out = ln_ffn_b_ref[...]

    Lc = L // n_chunks
    for i in range(n_chunks):                       # static loop over sequence chunks
        r0, r1 = i * Lc, (i + 1) * Lc
        y = _dot_t(attn_b[r0:r1, :], w1) + b1                       # expert w_1  (Lc, Dh)
        y = _layernorm(y, lng[i:i + 1, :], lnb[i:i + 1, :])         # layer_norm{i+1}
        y = jnp.maximum(y, 0.0).astype(cdt)                         # relu; dropout -> id
        z = _dot_t(y, w2) + b2                                      # expert w_2  (Lc, Dm)
        out_i = _layernorm(z + attn_out[r0:r1, :], g_out, b_out)    # fused final LN
        o_ref[0, r0:r1, :] = out_i.astype(o_ref.dtype)              # sublane-aligned store


def encoder_layer_forward(x, params, *, n_head, d_k, d_v, n_chunks=4,
                          compute_dtype=jnp.bfloat16,
                          vmem_limit_bytes=48 * 1024 * 1024):
    """x: (B, L, d_model) -> (B, L, d_model). params: PyTorch-layout weights (out, in)."""
    B, L, Dm = x.shape
    assert L % n_chunks == 0, "sequence length must be divisible by 4 (FFN chunking)"
    temperature = float(d_k) ** 0.5
    cdt = compute_dtype

    row2d = lambda a: a.reshape(1, -1).astype(jnp.float32)

    # Per-head weight layout + fold 1/temperature into w_qs (zero in-kernel cost).
    wq = (params["w_qs"] / temperature).reshape(n_head, d_k, Dm).astype(cdt)
    wk = params["w_ks"].reshape(n_head, d_k, Dm).astype(cdt)
    wv = params["w_vs"].reshape(n_head, d_v, Dm).astype(cdt)
    wfc = jnp.transpose(params["w_fc"].reshape(Dm, n_head, d_v), (1, 0, 2)).astype(cdt)

    inputs = (
        x.astype(cdt),
        wq, wk, wv, wfc,
        row2d(params["ln_attn_g"]), row2d(params["ln_attn_b"]),
        params["w1"].astype(cdt), row2d(params["b1"]),
        params["w2"].astype(cdt), row2d(params["b2"]),
        params["ln_chunk_g"].astype(jnp.float32), params["ln_chunk_b"].astype(jnp.float32),
        row2d(params["ln_ffn_g"]), row2d(params["ln_ffn_b"]),
    )

    def const_spec(a):
        zeros = (0,) * a.ndim
        # Grid-constant operand: never re-fetched, single buffer (halves weight VMEM).
        return pl.BlockSpec(a.shape, lambda b, _z=zeros: _z,
                            pipeline_mode=pl.Buffered(1))

    in_specs = [pl.BlockSpec((1, L, Dm), lambda b: (b, 0, 0))] + \
               [const_spec(a) for a in inputs[1:]]

    kernel = functools.partial(_encoder_layer_kernel, n_head=n_head, n_chunks=n_chunks)

    return pl.pallas_call(
        kernel,
        out_shape=jax.ShapeDtypeStruct((B, L, Dm), x.dtype),
        grid_spec=pltpu.PrefetchScalarGridSpec(
            num_scalar_prefetch=0,
            grid=(B,),
            in_specs=in_specs,
            out_specs=pl.BlockSpec((1, L, Dm), lambda b: (b, 0, 0)),
        ),
        compiler_params=pltpu.CompilerParams(
            dimension_semantics=("parallel",),          # even B keeps both v7x TCs busy
            vmem_limit_bytes=vmem_limit_bytes,          # explicit scoped-VMEM budget
        ),
    )(*inputs)


# ----------------------------- pure-JAX reference (f32) ------------------------------
def _reference(x, p, *, n_head, d_k, d_v, n_chunks=4, eps=1e-6):
    B, L, Dm = x.shape
    T = float(d_k) ** 0.5

    def lin(z, w, b=None):
        y = jnp.einsum("...i,oi->...o", z, w)
        return y if b is None else y + b

    def ln(z, g, b):
        m = jnp.mean(z, -1, keepdims=True)
        v = jnp.mean((z - m) ** 2, -1, keepdims=True)
        return (z - m) / jnp.sqrt(v + eps) * g + b

    residual = x
    q = lin(x, p["w_qs"]).reshape(B, L, n_head, d_k).transpose(0, 2, 1, 3)
    k = lin(x, p["w_ks"]).reshape(B, L, n_head, d_k).transpose(0, 2, 1, 3)
    v = lin(x, p["w_vs"]).reshape(B, L, n_head, d_v).transpose(0, 2, 1, 3)
    s = jnp.einsum("bhqd,bhkd->bhqk", q / T, k)
    a = jax.nn.softmax(s, axis=-1)
    ctx = jnp.einsum("bhqk,bhkd->bhqd", a, v).transpose(0, 2, 1, 3).reshape(B, L, n_head * d_v)
    ctx = jax.nn.relu(lin(ctx, p["w_fc"]))
    attn_out = ln(ctx + residual, p["ln_attn_g"], p["ln_attn_b"])

    Lc = L // n_chunks
    outs = []
    for i in range(n_chunks):
        xi = attn_out[:, i * Lc:(i + 1) * Lc, :]
        y = lin(xi, p["w1"], p["b1"])
        y = ln(y, p["ln_chunk_g"][i], p["ln_chunk_b"][i])
        y = jax.nn.relu(y)
        outs.append(lin(y, p["w2"], p["b2"]))
    ffn = jnp.concatenate(outs, axis=1)
    return ln(ffn + attn_out, p["ln_ffn_g"], p["ln_ffn_b"])


if __name__ == "__main__":
    # Small shapes consistent with the module: batch=2, seq=32 (divisible by 4, chunk=8 rows
    # -> sublane-aligned chunk stores), d_model=32, d_inner=64, n_head=2, d_k=d_v=16.
    B, L = 2, 32
    d_model, d_inner = 32, 64
    n_head, d_k, d_v = 2, 16, 16

    key = jax.random.PRNGKey(0)
    keys = jax.random.split(key, 16)
    r = lambda k, shape, s=0.2: s * jax.random.normal(k, shape, dtype=jnp.float32)

    params = {
        "w_qs": r(keys[0], (n_head * d_k, d_model)),
        "w_ks": r(keys[1], (n_head * d_k, d_model)),
        "w_vs": r(keys[2], (n_head * d_v, d_model)),
        "w_fc": r(keys[3], (d_model, n_head * d_v)),
        "ln_attn_g": 1.0 + r(keys[4], (d_model,), 0.05),
        "ln_attn_b": r(keys[5], (d_model,), 0.05),
        "w1": r(keys[6], (d_inner, d_model)),
        "b1": r(keys[7], (d_inner,), 0.05),
        "w2": r(keys[8], (d_model, d_inner)),
        "b2": r(keys[9], (d_model,), 0.05),
        "ln_chunk_g": 1.0 + r(keys[10], (4, d_inner), 0.05),
        "ln_chunk_b": r(keys[11], (4, d_inner), 0.05),
        "ln_ffn_g": 1.0 + r(keys[12], (d_model,), 0.05),
        "ln_ffn_b": r(keys[13], (d_model,), 0.05),
    }
    x = jax.random.normal(keys[14], (B, L, d_model), dtype=jnp.float32)

    out = encoder_layer_forward(x, params, n_head=n_head, d_k=d_k, d_v=d_v)
    out = jax.block_until_ready(out)

    ref = _reference(x, params, n_head=n_head, d_k=d_k, d_v=d_v)
    assert out.shape == (B, L, d_model)
    max_err = float(jnp.max(jnp.abs(out - ref)))
    mean_err = float(jnp.mean(jnp.abs(out - ref)))
    # bf16 MXU operands vs f32 reference -> bf16-class tolerance.
    assert jnp.allclose(out, ref, atol=8e-2, rtol=8e-2), \
        f"mismatch vs reference, max abs err={max_err}"
    assert mean_err < 3e-2, f"mean abs err too large: {mean_err}"

    print("KERNEL_OK")
</pallas_src>

<mosaic_0001>
module attributes {stable_mosaic.version = 11 : i64} {
  func.func @_encoder_layer_kernel(%arg0: i32, %arg1: memref<1x32x32xbf16, #tpu.memory_space<vmem>>, %arg2: memref<2x16x32xbf16, #tpu.memory_space<vmem>>, %arg3: memref<2x16x32xbf16, #tpu.memory_space<vmem>>, %arg4: memref<2x16x32xbf16, #tpu.memory_space<vmem>>, %arg5: memref<2x32x16xbf16, #tpu.memory_space<vmem>>, %arg6: memref<1x32xf32, #tpu.memory_space<vmem>>, %arg7: memref<1x32xf32, #tpu.memory_space<vmem>>, %arg8: memref<64x32xbf16, #tpu.memory_space<vmem>>, %arg9: memref<1x64xf32, #tpu.memory_space<vmem>>, %arg10: memref<32x64xbf16, #tpu.memory_space<vmem>>, %arg11: memref<1x32xf32, #tpu.memory_space<vmem>>, %arg12: memref<4x64xf32, #tpu.memory_space<vmem>>, %arg13: memref<4x64xf32, #tpu.memory_space<vmem>>, %arg14: memref<1x32xf32, #tpu.memory_space<vmem>>, %arg15: memref<1x32xf32, #tpu.memory_space<vmem>>, %arg16: memref<1x32x32xf32, #tpu.memory_space<vmem>>) attributes {dimension_semantics = [#tpu.dimension_semantics<parallel>], iteration_bounds = array<i64: 2>, scalar_prefetch = 0 : i64, scratch_operands = 0 : i64, tpu.core_type = #tpu.core_type<tc>, window_params = [{transform_indices = @transform_0, window_bounds = array<i64: 1, 32, 32>}, {pipeline_mode = #tpu.pipeline_mode<synchronous>, transform_indices = @transform_1, window_bounds = array<i64: 2, 16, 32>}, {pipeline_mode = #tpu.pipeline_mode<synchronous>, transform_indices = @transform_2, window_bounds = array<i64: 2, 16, 32>}, {pipeline_mode = #tpu.pipeline_mode<synchronous>, transform_indices = @transform_3, window_bounds = array<i64: 2, 16, 32>}, {pipeline_mode = #tpu.pipeline_mode<synchronous>, transform_indices = @transform_4, window_bounds = array<i64: 2, 32, 16>}, {pipeline_mode = #tpu.pipeline_mode<synchronous>, transform_indices = @transform_5, window_bounds = array<i64: 1, 32>}, {pipeline_mode = #tpu.pipeline_mode<synchronous>, transform_indices = @transform_6, window_bounds = array<i64: 1, 32>}, {pipeline_mode = #tpu.pipeline_mode<synchronous>, transform_indices = @transform_7, window_bounds = array<i64: 64, 32>}, {pipeline_mode = #tpu.pipeline_mode<synchronous>, transform_indices = @transform_8, window_bounds = array<i64: 1, 64>}, {pipeline_mode = #tpu.pipeline_mode<synchronous>, transform_indices = @transform_9, window_bounds = array<i64: 32, 64>}, {pipeline_mode = #tpu.pipeline_mode<synchronous>, transform_indices = @transform_10, window_bounds = array<i64: 1, 32>}, {pipeline_mode = #tpu.pipeline_mode<synchronous>, transform_indices = @transform_11, window_bounds = array<i64: 4, 64>}, {pipeline_mode = #tpu.pipeline_mode<synchronous>, transform_indices = @transform_12, window_bounds = array<i64: 4, 64>}, {pipeline_mode = #tpu.pipeline_mode<synchronous>, transform_indices = @transform_13, window_bounds = array<i64: 1, 32>}, {pipeline_mode = #tpu.pipeline_mode<synchronous>, transform_indices = @transform_14, window_bounds = array<i64: 1, 32>}, {transform_indices = @transform_15, window_bounds = array<i64: 1, 32, 32>}]} {
    %c0 = arith.constant 0 : index
    %c0_0 = arith.constant 0 : index
    %c0_1 = arith.constant 0 : index
    %0 = vector.load %arg1[%c0, %c0_0, %c0_1] : memref<1x32x32xbf16, #tpu.memory_space<vmem>>, vector<1x32x32xbf16>
    %1 = vector.shape_cast %0 : vector<1x32x32xbf16> to vector<32x32xbf16>
    %2 = arith.extf %1 : vector<32x32xbf16> to vector<32x32xf32>
    %cst = arith.constant 0.000000e+00 : f32
    %3 = vector.broadcast %cst : f32 to vector<32x32xf32>
    %c0_2 = arith.constant 0 : index
    %c0_3 = arith.constant 0 : index
    %c0_4 = arith.constant 0 : index
    %4 = vector.load %arg2[%c0_2, %c0_3, %c0_4] : memref<2x16x32xbf16, #tpu.memory_space<vmem>>, vector<1x16x32xbf16>
    %5 = vector.shape_cast %4 : vector<1x16x32xbf16> to vector<16x32xbf16>
    %cst_5 = arith.constant dense<0.000000e+00> : vector<32x16xf32>
    %6 = tpu.matmul %1, %5, %cst_5 {dimension_numbers = #tpu.dot_dimension_numbers<[1], [1], [0], [0], [0, 0, 1, 0], [], []>} : vector<32x32xbf16>, vector<16x32xbf16>, vector<32x16xf32> -> vector<32x16xf32>
    %7 = arith.truncf %6 : vector<32x16xf32> to vector<32x16xbf16>
    %c0_6 = arith.constant 0 : index
    %c0_7 = arith.constant 0 : index
    %c0_8 = arith.constant 0 : index
    %8 = vector.load %arg3[%c0_6, %c0_7, %c0_8] : memref<2x16x32xbf16, #tpu.memory_space<vmem>>, vector<1x16x32xbf16>
    %9 = vector.shape_cast %8 : vector<1x16x32xbf16> to vector<16x32xbf16>
    %cst_9 = arith.constant dense<0.000000e+00> : vector<32x16xf32>
    %10 = tpu.matmul %1, %9, %cst_9 {dimension_numbers = #tpu.dot_dimension_numbers<[1], [1], [0], [0], [0, 0, 1, 0], [], []>} : vector<32x32xbf16>, vector<16x32xbf16>, vector<32x16xf32> -> vector<32x16xf32>
    %11 = arith.truncf %10 : vector<32x16xf32> to vector<32x16xbf16>
    %c0_10 = arith.constant 0 : index
    %c0_11 = arith.constant 0 : index
    %c0_12 = arith.constant 0 : index
    %12 = vector.load %arg4[%c0_10, %c0_11, %c0_12] : memref<2x16x32xbf16, #tpu.memory_space<vmem>>, vector<1x16x32xbf16>
    %13 = vector.shape_cast %12 : vector<1x16x32xbf16> to vector<16x32xbf16>
    %cst_13 = arith.constant dense<0.000000e+00> : vector<32x16xf32>
    %14 = tpu.matmul %1, %13, %cst_13 {dimension_numbers = #tpu.dot_dimension_numbers<[1], [1], [0], [0], [0, 0, 1, 0], [], []>} : vector<32x32xbf16>, vector<16x32xbf16>, vector<32x16xf32> -> vector<32x16xf32>
    %15 = arith.truncf %14 : vector<32x16xf32> to vector<32x16xbf16>
    %cst_14 = arith.constant dense<0.000000e+00> : vector<32x32xf32>
    %16 = tpu.matmul %7, %11, %cst_14 {dimension_numbers = #tpu.dot_dimension_numbers<[1], [1], [0], [0], [0, 0, 1, 0], [], []>} : vector<32x16xbf16>, vector<32x16xbf16>, vector<32x32xf32> -> vector<32x32xf32>
    %cst_15 = arith.constant dense<0xFF800000> : vector<32xf32>
    %17 = vector.multi_reduction <maximumf>, %16, %cst_15 [1] : vector<32x32xf32> to vector<32xf32>
    %18 = vector.shape_cast %17 : vector<32xf32> to vector<32x1xf32>
    %19 = vector.broadcast %18 : vector<32x1xf32> to vector<32x32xf32>
    %20 = arith.subf %16, %19 : vector<32x32xf32>
    %21 = math.exp %20 : vector<32x32xf32>
    %cst_16 = arith.constant dense<0.000000e+00> : vector<32xf32>
    %22 = vector.multi_reduction <add>, %21, %cst_16 [1] : vector<32x32xf32> to vector<32xf32>
    %23 = vector.shape_cast %22 : vector<32xf32> to vector<32x1xf32>
    %24 = tpu.reciprocal %23 {approx = true} : vector<32x1xf32> -> vector<32x1xf32>
    %25 = vector.broadcast %24 : vector<32x1xf32> to vector<32x32xf32>
    %26 = arith.mulf %21, %25 : vector<32x32xf32>
    %27 = arith.truncf %26 : vector<32x32xf32> to vector<32x32xbf16>
    %cst_17 = arith.constant dense<0.000000e+00> : vector<32x16xf32>
    %28 = tpu.matmul %27, %15, %cst_17 {dimension_numbers = #tpu.dot_dimension_numbers<[1], [0], [0], [1], [0, 0, 1, 1], [], []>} : vector<32x32xbf16>, vector<32x16xbf16>, vector<32x16xf32> -> vector<32x16xf32>
    %29 = arith.truncf %28 : vector<32x16xf32> to vector<32x16xbf16>
    %c0_18 = arith.constant 0 : index
    %c0_19 = arith.constant 0 : index
    %c0_20 = arith.constant 0 : index
    %30 = vector.load %arg5[%c0_18, %c0_19, %c0_20] : memref<2x32x16xbf16, #tpu.memory_space<vmem>>, vector<1x32x16xbf16>
    %31 = vector.shape_cast %30 : vector<1x32x16xbf16> to vector<32x16xbf16>
    %cst_21 = arith.constant dense<0.000000e+00> : vector<32x32xf32>
    %32 = tpu.matmul %29, %31, %cst_21 {dimension_numbers = #tpu.dot_dimension_numbers<[1], [1], [0], [0], [0, 0, 1, 0], [], []>} : vector<32x16xbf16>, vector<32x16xbf16>, vector<32x32xf32> -> vector<32x32xf32>
    %33 = arith.addf %3, %32 : vector<32x32xf32>
    %c1 = arith.constant 1 : index
    %c0_22 = arith.constant 0 : index
    %c0_23 = arith.constant 0 : index
    %34 = vector.load %arg2[%c1, %c0_22, %c0_23] : memref<2x16x32xbf16, #tpu.memory_space<vmem>>, vector<1x16x32xbf16>
    %35 = vector.shape_cast %34 : vector<1x16x32xbf16> to vector<16x32xbf16>
    %cst_24 = arith.constant dense<0.000000e+00> : vector<32x16xf32>
    %36 = tpu.matmul %1, %35, %cst_24 {dimension_numbers = #tpu.dot_dimension_numbers<[1], [1], [0], [0], [0, 0, 1, 0], [], []>} : vector<32x32xbf16>, vector<16x32xbf16>, vector<32x16xf32> -> vector<32x16xf32>
    %37 = arith.truncf %36 : vector<32x16xf32> to vector<32x16xbf16>
    %c1_25 = arith.constant 1 : index
    %c0_26 = arith.constant 0 : index
    %c0_27 = arith.constant 0 : index
    %38 = vector.load %arg3[%c1_25, %c0_26, %c0_27] : memref<2x16x32xbf16, #tpu.memory_space<vmem>>, vector<1x16x32xbf16>
    %39 = vector.shape_cast %38 : vector<1x16x32xbf16> to vector<16x32xbf16>
    %cst_28 = arith.constant dense<0.000000e+00> : vector<32x16xf32>
    %40 = tpu.matmul %1, %39, %cst_28 {dimension_numbers = #tpu.dot_dimension_numbers<[1], [1], [0], [0], [0, 0, 1, 0], [], []>} : vector<32x32xbf16>, vector<16x32xbf16>, vector<32x16xf32> -> vector<32x16xf32>
    %41 = arith.truncf %40 : vector<32x16xf32> to vector<32x16xbf16>
    %c1_29 = arith.constant 1 : index
    %c0_30 = arith.constant 0 : index
    %c0_31 = arith.constant 0 : index
    %42 = vector.load %arg4[%c1_29, %c0_30, %c0_31] : memref<2x16x32xbf16, #tpu.memory_space<vmem>>, vector<1x16x32xbf16>
    %43 = vector.shape_cast %42 : vector<1x16x32xbf16> to vector<16x32xbf16>
    %cst_32 = arith.constant dense<0.000000e+00> : vector<32x16xf32>
    %44 = tpu.matmul %1, %43, %cst_32 {dimension_numbers = #tpu.dot_dimension_numbers<[1], [1], [0], [0], [0, 0, 1, 0], [], []>} : vector<32x32xbf16>, vector<16x32xbf16>, vector<32x16xf32> -> vector<32x16xf32>
    %45 = arith.truncf %44 : vector<32x16xf32> to vector<32x16xbf16>
    %cst_33 = arith.constant dense<0.000000e+00> : vector<32x32xf32>
    %46 = tpu.matmul %37, %41, %cst_33 {dimension_numbers = #tpu.dot_dimension_numbers<[1], [1], [0], [0], [0, 0, 1, 0], [], []>} : vector<32x16xbf16>, vector<32x16xbf16>, vector<32x32xf32> -> vector<32x32xf32>
    %cst_34 = arith.constant dense<0xFF800000> : vector<32xf32>
    %47 = vector.multi_reduction <maximumf>, %46, %cst_34 [1] : vector<32x32xf32> to vector<32xf32>
    %48 = vector.shape_cast %47 : vector<32xf32> to vector<32x1xf32>
    %49 = vector.broadcast %48 : vector<32x1xf32> to vector<32x32xf32>
    %50 = arith.subf %46, %49 : vector<32x32xf32>
    %51 = math.exp %50 : vector<32x32xf32>
    %cst_35 = arith.constant dense<0.000000e+00> : vector<32xf32>
    %52 = vector.multi_reduction <add>, %51, %cst_35 [1] : vector<32x32xf32> to vector<32xf32>
    %53 = vector.shape_cast %52 : vector<32xf32> to vector<32x1xf32>
    %54 = tpu.reciprocal %53 {approx = true} : vector<32x1xf32> -> vector<32x1xf32>
    %55 = vector.broadcast %54 : vector<32x1xf32> to vector<32x32xf32>
    %56 = arith.mulf %51, %55 : vector<32x32xf32>
    %57 = arith.truncf %56 : vector<32x32xf32> to vector<32x32xbf16>
    %cst_36 = arith.constant dense<0.000000e+00> : vector<32x16xf32>
    %58 = tpu.matmul %57, %45, %cst_36 {dimension_numbers = #tpu.dot_dimension_numbers<[1], [0], [0], [1], [0, 0, 1, 1], [], []>} : vector<32x32xbf16>, vector<32x16xbf16>, vector<32x16xf32> -> vector<32x16xf32>
    %59 = arith.truncf %58 : vector<32x16xf32> to vector<32x16xbf16>
    %c1_37 = arith.constant 1 : index
    %c0_38 = arith.constant 0 : index
    %c0_39 = arith.constant 0 : index
    %60 = vector.load %arg5[%c1_37, %c0_38, %c0_39] : memref<2x32x16xbf16, #tpu.memory_space<vmem>>, vector<1x32x16xbf16>
    %61 = vector.shape_cast %60 : vector<1x32x16xbf16> to vector<32x16xbf16>
    %cst_40 = arith.constant dense<0.000000e+00> : vector<32x32xf32>
    %62 = tpu.matmul %59, %61, %cst_40 {dimension_numbers = #tpu.dot_dimension_numbers<[1], [1], [0], [0], [0, 0, 1, 0], [], []>} : vector<32x16xbf16>, vector<32x16xbf16>, vector<32x32xf32> -> vector<32x32xf32>
    %63 = arith.addf %33, %62 : vector<32x32xf32>
    %cst_41 = arith.constant 0.000000e+00 : f32
    %64 = vector.broadcast %cst_41 : f32 to vector<32x32xf32>
    %65 = arith.maximumf %63, %64 : vector<32x32xf32>
    %66 = arith.addf %65, %2 : vector<32x32xf32>
    %c0_42 = arith.constant 0 : index
    %c0_43 = arith.constant 0 : index
    %67 = vector.load %arg6[%c0_42, %c0_43] : memref<1x32xf32, #tpu.memory_space<vmem>>, vector<1x32xf32>
    %c0_44 = arith.constant 0 : index
    %c0_45 = arith.constant 0 : index
    %68 = vector.load %arg7[%c0_44, %c0_45] : memref<1x32xf32, #tpu.memory_space<vmem>>, vector<1x32xf32>
    %cst_46 = arith.constant dense<0.000000e+00> : vector<32xf32>
    %69 = vector.multi_reduction <add>, %66, %cst_46 [1] : vector<32x32xf32> to vector<32xf32>
    %70 = vector.shape_cast %69 : vector<32xf32> to vector<32x1xf32>
    %cst_47 = arith.constant 3.200000e+01 : f32
    %71 = vector.broadcast %cst_47 : f32 to vector<32x1xf32>
    %72 = arith.divf %70, %71 : vector<32x1xf32>
    %73 = vector.broadcast %72 : vector<32x1xf32> to vector<32x32xf32>
    %74 = arith.subf %66, %73 : vector<32x32xf32>
    %75 = arith.mulf %74, %74 : vector<32x32xf32>
    %cst_48 = arith.constant dense<0.000000e+00> : vector<32xf32>
    %76 = vector.multi_reduction <add>, %75, %cst_48 [1] : vector<32x32xf32> to vector<32xf32>
    %77 = vector.shape_cast %76 : vector<32xf32> to vector<32x1xf32>
    %cst_49 = arith.constant 3.200000e+01 : f32
    %78 = vector.broadcast %cst_49 : f32 to vector<32x1xf32>
    %79 = arith.divf %77, %78 : vector<32x1xf32>
    %cst_50 = arith.constant 9.99999997E-7 : f32
    %80 = vector.broadcast %cst_50 : f32 to vector<32x1xf32>
    %81 = arith.addf %79, %80 : vector<32x1xf32>
    %82 = math.rsqrt %81 : vector<32x1xf32>
    %83 = vector.broadcast %82 : vector<32x1xf32> to vector<32x32xf32>
    %84 = arith.mulf %74, %83 : vector<32x32xf32>
    %85 = vector.broadcast %67 : vector<1x32xf32> to vector<32x32xf32>
    %86 = arith.mulf %84, %85 : vector<32x32xf32>
    %87 = vector.broadcast %68 : vector<1x32xf32> to vector<32x32xf32>
    %88 = arith.addf %86, %87 : vector<32x32xf32>
    %89 = arith.truncf %88 : vector<32x32xf32> to vector<32x32xbf16>
    %c0_51 = arith.constant 0 : index
    %c0_52 = arith.constant 0 : index
    %90 = vector.load %arg8[%c0_51, %c0_52] : memref<64x32xbf16, #tpu.memory_space<vmem>>, vector<64x32xbf16>
    %c0_53 = arith.constant 0 : index
    %c0_54 = arith.constant 0 : index
    %91 = vector.load %arg9[%c0_53, %c0_54] : memref<1x64xf32, #tpu.memory_space<vmem>>, vector<1x64xf32>
    %c0_55 = arith.constant 0 : index
    %c0_56 = arith.constant 0 : index
    %92 = vector.load %arg10[%c0_55, %c0_56] : memref<32x64xbf16, #tpu.memory_space<vmem>>, vector<32x64xbf16>
    %c0_57 = arith.constant 0 : index
    %c0_58 = arith.constant 0 : index
    %93 = vector.load %arg11[%c0_57, %c0_58] : memref<1x32xf32, #tpu.memory_space<vmem>>, vector<1x32xf32>
    %c0_59 = arith.constant 0 : index
    %c0_60 = arith.constant 0 : index
    %94 = vector.load %arg12[%c0_59, %c0_60] : memref<4x64xf32, #tpu.memory_space<vmem>>, vector<4x64xf32>
    %c0_61 = arith.constant 0 : index
    %c0_62 = arith.constant 0 : index
    %95 = vector.load %arg13[%c0_61, %c0_62] : memref<4x64xf32, #tpu.memory_space<vmem>>, vector<4x64xf32>
    %c0_63 = arith.constant 0 : index
    %c0_64 = arith.constant 0 : index
    %96 = vector.load %arg14[%c0_63, %c0_64] : memref<1x32xf32, #tpu.memory_space<vmem>>, vector<1x32xf32>
    %c0_65 = arith.constant 0 : index
    %c0_66 = arith.constant 0 : index
    %97 = vector.load %arg15[%c0_65, %c0_66] : memref<1x32xf32, #tpu.memory_space<vmem>>, vector<1x32xf32>
    %98 = vector.extract_strided_slice %89 {offsets = [0, 0], sizes = [8, 32], strides = [1, 1]} : vector<32x32xbf16> to vector<8x32xbf16>
    %cst_67 = arith.constant dense<0.000000e+00> : vector<8x64xf32>
    %99 = tpu.matmul %98, %90, %cst_67 {dimension_numbers = #tpu.dot_dimension_numbers<[1], [1], [0], [0], [0, 0, 1, 0], [], []>} : vector<8x32xbf16>, vector<64x32xbf16>, vector<8x64xf32> -> vector<8x64xf32>
    %100 = vector.broadcast %91 : vector<1x64xf32> to vector<8x64xf32>
    %101 = arith.addf %99, %100 : vector<8x64xf32>
    %102 = vector.extract_strided_slice %94 {offsets = [0, 0], sizes = [1, 64], strides = [1, 1]} : vector<4x64xf32> to vector<1x64xf32>
    %103 = vector.extract_strided_slice %95 {offsets = [0, 0], sizes = [1, 64], strides = [1, 1]} : vector<4x64xf32> to vector<1x64xf32>
    %cst_68 = arith.constant dense<0.000000e+00> : vector<8xf32>
    %104 = vector.multi_reduction <add>, %101, %cst_68 [1] : vector<8x64xf32> to vector<8xf32>
    %105 = vector.shape_cast %104 : vector<8xf32> to vector<8x1xf32>
    %cst_69 = arith.constant 6.400000e+01 : f32
    %106 = vector.broadcast %cst_69 : f32 to vector<8x1xf32>
    %107 = arith.divf %105, %106 : vector<8x1xf32>
    %108 = vector.broadcast %107 : vector<8x1xf32> to vector<8x64xf32>
    %109 = arith.subf %101, %108 : vector<8x64xf32>
    %110 = arith.mulf %109, %109 : vector<8x64xf32>
    %cst_70 = arith.constant dense<0.000000e+00> : vector<8xf32>
    %111 = vector.multi_reduction <add>, %110, %cst_70 [1] : vector<8x64xf32> to vector<8xf32>
    %112 = vector.shape_cast %111 : vector<8xf32> to vector<8x1xf32>
    %cst_71 = arith.constant 6.400000e+01 : f32
    %113 = vector.broadcast %cst_71 : f32 to vector<8x1xf32>
    %114 = arith.divf %112, %113 : vector<8x1xf32>
    %cst_72 = arith.constant 9.99999997E-7 : f32
    %115 = vector.broadcast %cst_72 : f32 to vector<8x1xf32>
    %116 = arith.addf %114, %115 : vector<8x1xf32>
    %117 = math.rsqrt %116 : vector<8x1xf32>
    %118 = vector.broadcast %117 : vector<8x1xf32> to vector<8x64xf32>
    %119 = arith.mulf %109, %118 : vector<8x64xf32>
    %120 = vector.broadcast %102 : vector<1x64xf32> to vector<8x64xf32>
    %121 = arith.mulf %119, %120 : vector<8x64xf32>
    %122 = vector.broadcast %103 : vector<1x64xf32> to vector<8x64xf32>
    %123 = arith.addf %121, %122 : vector<8x64xf32>
    %cst_73 = arith.constant 0.000000e+00 : f32
    %124 = vector.broadcast %cst_73 : f32 to vector<8x64xf32>
    %125 = arith.maximumf %123, %124 : vector<8x64xf32>
    %126 = arith.truncf %125 : vector<8x64xf32> to vector<8x64xbf16>
    %cst_74 = arith.constant dense<0.000000e+00> : vector<8x32xf32>
    %127 = tpu.matmul %126, %92, %cst_74 {dimension_numbers = #tpu.dot_dimension_numbers<[1], [1], [0], [0], [0, 0, 1, 0], [], []>} : vector<8x64xbf16>, vector<32x64xbf16>, vector<8x32xf32> -> vector<8x32xf32>
    %128 = vector.broadcast %93 : vector<1x32xf32> to vector<8x32xf32>
    %129 = arith.addf %127, %128 : vector<8x32xf32>
    %130 = vector.extract_strided_slice %88 {offsets = [0, 0], sizes = [8, 32], strides = [1, 1]} : vector<32x32xf32> to vector<8x32xf32>
    %131 = arith.addf %129, %130 : vector<8x32xf32>
    %cst_75 = arith.constant dense<0.000000e+00> : vector<8xf32>
    %132 = vector.multi_reduction <add>, %131, %cst_75 [1] : vector<8x32xf32> to vector<8xf32>
    %133 = vector.shape_cast %132 : vector<8xf32> to vector<8x1xf32>
    %cst_76 = arith.constant 3.200000e+01 : f32
    %134 = vector.broadcast %cst_76 : f32 to vector<8x1xf32>
    %135 = arith.divf %133, %134 : vector<8x1xf32>
    %136 = vector.broadcast %135 : vector<8x1xf32> to vector<8x32xf32>
    %137 = arith.subf %131, %136 : vector<8x32xf32>
    %138 = arith.mulf %137, %137 : vector<8x32xf32>
    %cst_77 = arith.constant dense<0.000000e+00> : vector<8xf32>
    %139 = vector.multi_reduction <add>, %138, %cst_77 [1] : vector<8x32xf32> to vector<8xf32>
    %140 = vector.shape_cast %139 : vector<8xf32> to vector<8x1xf32>
    %cst_78 = arith.constant 3.200000e+01 : f32
    %141 = vector.broadcast %cst_78 : f32 to vector<8x1xf32>
    %142 = arith.divf %140, %141 : vector<8x1xf32>
    %cst_79 = arith.constant 9.99999997E-7 : f32
    %143 = vector.broadcast %cst_79 : f32 to vector<8x1xf32>
    %144 = arith.addf %142, %143 : vector<8x1xf32>
    %145 = math.rsqrt %144 : vector<8x1xf32>
    %146 = vector.broadcast %145 : vector<8x1xf32> to vector<8x32xf32>
    %147 = arith.mulf %137, %146 : vector<8x32xf32>
    %148 = vector.broadcast %96 : vector<1x32xf32> to vector<8x32xf32>
    %149 = arith.mulf %147, %148 : vector<8x32xf32>
    %150 = vector.broadcast %97 : vector<1x32xf32> to vector<8x32xf32>
    %151 = arith.addf %149, %150 : vector<8x32xf32>
    %c0_80 = arith.constant 0 : index
    %c0_81 = arith.constant 0 : index
    %c0_82 = arith.constant 0 : index
    %152 = vector.load %arg16[%c0_80, %c0_81, %c0_82] : memref<1x32x32xf32, #tpu.memory_space<vmem>>, vector<1x8x32xf32>
    %153 = vector.shape_cast %152 : vector<1x8x32xf32> to vector<8x32xf32>
    %154 = vector.shape_cast %151 : vector<8x32xf32> to vector<1x8x32xf32>
    tpu.vector_store %arg16[%c0_80, %c0_81, %c0_82], %154 {strides = array<i32>} : memref<1x32x32xf32, #tpu.memory_space<vmem>>, vector<1x8x32xf32>,
    %155 = vector.extract_strided_slice %89 {offsets = [8, 0], sizes = [8, 32], strides = [1, 1]} : vector<32x32xbf16> to vector<8x32xbf16>
    %cst_83 = arith.constant dense<0.000000e+00> : vector<8x64xf32>
    %156 = tpu.matmul %155, %90, %cst_83 {dimension_numbers = #tpu.dot_dimension_numbers<[1], [1], [0], [0], [0, 0, 1, 0], [], []>} : vector<8x32xbf16>, vector<64x32xbf16>, vector<8x64xf32> -> vector<8x64xf32>
    %157 = vector.broadcast %91 : vector<1x64xf32> to vector<8x64xf32>
    %158 = arith.addf %156, %157 : vector<8x64xf32>
    %159 = vector.extract_strided_slice %94 {offsets = [1, 0], sizes = [1, 64], strides = [1, 1]} : vector<4x64xf32> to vector<1x64xf32>
    %160 = vector.extract_strided_slice %95 {offsets = [1, 0], sizes = [1, 64], strides = [1, 1]} : vector<4x64xf32> to vector<1x64xf32>
    %cst_84 = arith.constant dense<0.000000e+00> : vector<8xf32>
    %161 = vector.multi_reduction <add>, %158, %cst_84 [1] : vector<8x64xf32> to vector<8xf32>
    %162 = vector.shape_cast %161 : vector<8xf32> to vector<8x1xf32>
    %cst_85 = arith.constant 6.400000e+01 : f32
    %163 = vector.broadcast %cst_85 : f32 to vector<8x1xf32>
    %164 = arith.divf %162, %163 : vector<8x1xf32>
    %165 = vector.broadcast %164 : vector<8x1xf32> to vector<8x64xf32>
    %166 = arith.subf %158, %165 : vector<8x64xf32>
    %167 = arith.mulf %166, %166 : vector<8x64xf32>
    %cst_86 = arith.constant dense<0.000000e+00> : vector<8xf32>
    %168 = vector.multi_reduction <add>, %167, %cst_86 [1] : vector<8x64xf32> to vector<8xf32>
    %169 = vector.shape_cast %168 : vector<8xf32> to vector<8x1xf32>
    %cst_87 = arith.constant 6.400000e+01 : f32
    %170 = vector.broadcast %cst_87 : f32 to vector<8x1xf32>
    %171 = arith.divf %169, %170 : vector<8x1xf32>
    %cst_88 = arith.constant 9.99999997E-7 : f32
    %172 = vector.broadcast %cst_88 : f32 to vector<8x1xf32>
    %173 = arith.addf %171, %172 : vector<8x1xf32>
    %174 = math.rsqrt %173 : vector<8x1xf32>
    %175 = vector.broadcast %174 : vector<8x1xf32> to vector<8x64xf32>
    %176 = arith.mulf %166, %175 : vector<8x64xf32>
    %177 = vector.broadcast %159 : vector<1x64xf32> to vector<8x64xf32>
    %178 = arith.mulf %176, %177 : vector<8x64xf32>
    %179 = vector.broadcast %160 : vector<1x64xf32> to vector<8x64xf32>
    %180 = arith.addf %178, %179 : vector<8x64xf32>
    %cst_89 = arith.constant 0.000000e+00 : f32
    %181 = vector.broadcast %cst_89 : f32 to vector<8x64xf32>
    %182 = arith.maximumf %180, %181 : vector<8x64xf32>
    %183 = arith.truncf %182 : vector<8x64xf32> to vector<8x64xbf16>
    %cst_90 = arith.constant dense<0.000000e+00> : vector<8x32xf32>
    %184 = tpu.matmul %183, %92, %cst_90 {dimension_numbers = #tpu.dot_dimension_numbers<[1], [1], [0], [0], [0, 0, 1, 0], [], []>} : vector<8x64xbf16>, vector<32x64xbf16>, vector<8x32xf32> -> vector<8x32xf32>
    %185 = vector.broadcast %93 : vector<1x32xf32> to vector<8x32xf32>
    %186 = arith.addf %184, %185 : vector<8x32xf32>
    %187 = vector.extract_strided_slice %88 {offsets = [8, 0], sizes = [8, 32], strides = [1, 1]} : vector<32x32xf32> to vector<8x32xf32>
    %188 = arith.addf %186, %187 : vector<8x32xf32>
    %cst_91 = arith.constant dense<0.000000e+00> : vector<8xf32>
    %189 = vector.multi_reduction <add>, %188, %cst_91 [1] : vector<8x32xf32> to vector<8xf32>
    %190 = vector.shape_cast %189 : vector<8xf32> to vector<8x1xf32>
    %cst_92 = arith.constant 3.200000e+01 : f32
    %191 = vector.broadcast %cst_92 : f32 to vector<8x1xf32>
    %192 = arith.divf %190, %191 : vector<8x1xf32>
    %193 = vector.broadcast %192 : vector<8x1xf32> to vector<8x32xf32>
    %194 = arith.subf %188, %193 : vector<8x32xf32>
    %195 = arith.mulf %194, %194 : vector<8x32xf32>
    %cst_93 = arith.constant dense<0.000000e+00> : vector<8xf32>
    %196 = vector.multi_reduction <add>, %195, %cst_93 [1] : vector<8x32xf32> to vector<8xf32>
    %197 = vector.shape_cast %196 : vector<8xf32> to vector<8x1xf32>
    %cst_94 = arith.constant 3.200000e+01 : f32
    %198 = vector.broadcast %cst_94 : f32 to vector<8x1xf32>
    %199 = arith.divf %197, %198 : vector<8x1xf32>
    %cst_95 = arith.constant 9.99999997E-7 : f32
    %200 = vector.broadcast %cst_95 : f32 to vector<8x1xf32>
    %201 = arith.addf %199, %200 : vector<8x1xf32>
    %202 = math.rsqrt %201 : vector<8x1xf32>
    %203 = vector.broadcast %202 : vector<8x1xf32> to vector<8x32xf32>
    %204 = arith.mulf %194, %203 : vector<8x32xf32>
    %205 = vector.broadcast %96 : vector<1x32xf32> to vector<8x32xf32>
    %206 = arith.mulf %204, %205 : vector<8x32xf32>
    %207 = vector.broadcast %97 : vector<1x32xf32> to vector<8x32xf32>
    %208 = arith.addf %206, %207 : vector<8x32xf32>
    %c0_96 = arith.constant 0 : index
    %c8 = arith.constant 8 : index
    %c0_97 = arith.constant 0 : index
    %209 = vector.load %arg16[%c0_96, %c8, %c0_97] : memref<1x32x32xf32, #tpu.memory_space<vmem>>, vector<1x8x32xf32>
    %210 = vector.shape_cast %209 : vector<1x8x32xf32> to vector<8x32xf32>
    %211 = vector.shape_cast %208 : vector<8x32xf32> to vector<1x8x32xf32>
    tpu.vector_store %arg16[%c0_96, %c8, %c0_97], %211 {strides = array<i32>} : memref<1x32x32xf32, #tpu.memory_space<vmem>>, vector<1x8x32xf32>,
    %212 = vector.extract_strided_slice %89 {offsets = [16, 0], sizes = [8, 32], strides = [1, 1]} : vector<32x32xbf16> to vector<8x32xbf16>
    %cst_98 = arith.constant dense<0.000000e+00> : vector<8x64xf32>
    %213 = tpu.matmul %212, %90, %cst_98 {dimension_numbers = #tpu.dot_dimension_numbers<[1], [1], [0], [0], [0, 0, 1, 0], [], []>} : vector<8x32xbf16>, vector<64x32xbf16>, vector<8x64xf32> -> vector<8x64xf32>
    %214 = vector.broadcast %91 : vector<1x64xf32> to vector<8x64xf32>
    %215 = arith.addf %213, %214 : vector<8x64xf32>
    %216 = vector.extract_strided_slice %94 {offsets = [2, 0], sizes = [1, 64], strides = [1, 1]} : vector<4x64xf32> to vector<1x64xf32>
    %217 = vector.extract_strided_slice %95 {offsets = [2, 0], sizes = [1, 64], strides = [1, 1]} : vector<4x64xf32> to vector<1x64xf32>
    %cst_99 = arith.constant dense<0.000000e+00> : vector<8xf32>
    %218 = vector.multi_reduction <add>, %215, %cst_99 [1] : vector<8x64xf32> to vector<8xf32>
    %219 = vector.shape_cast %218 : vector<8xf32> to vector<8x1xf32>
    %cst_100 = arith.constant 6.400000e+01 : f32
    %220 = vector.broadcast %cst_100 : f32 to vector<8x1xf32>
    %221 = arith.divf %219, %220 : vector<8x1xf32>
    %222 = vector.broadcast %221 : vector<8x1xf32> to vector<8x64xf32>
    %223 = arith.subf %215, %222 : vector<8x64xf32>
    %224 = arith.mulf %223, %223 : vector<8x64xf32>
    %cst_101 = arith.constant dense<0.000000e+00> : vector<8xf32>
    %225 = vector.multi_reduction <add>, %224, %cst_101 [1] : vector<8x64xf32> to vector<8xf32>
    %226 = vector.shape_cast %225 : vector<8xf32> to vector<8x1xf32>
    %cst_102 = arith.constant 6.400000e+01 : f32
    %227 = vector.broadcast %cst_102 : f32 to vector<8x1xf32>
    %228 = arith.divf %226, %227 : vector<8x1xf32>
    %cst_103 = arith.constant 9.99999997E-7 : f32
    %229 = vector.broadcast %cst_103 : f32 to vector<8x1xf32>
    %230 = arith.addf %228, %229 : vector<8x1xf32>
    %231 = math.rsqrt %230 : vector<8x1xf32>
    %232 = vector.broadcast %231 : vector<8x1xf32> to vector<8x64xf32>
    %233 = arith.mulf %223, %232 : vector<8x64xf32>
    %234 = vector.broadcast %216 : vector<1x64xf32> to vector<8x64xf32>
    %235 = arith.mulf %233, %234 : vector<8x64xf32>
    %236 = vector.broadcast %217 : vector<1x64xf32> to vector<8x64xf32>
    %237 = arith.addf %235, %236 : vector<8x64xf32>
    %cst_104 = arith.constant 0.000000e+00 : f32
    %238 = vector.broadcast %cst_104 : f32 to vector<8x64xf32>
    %239 = arith.maximumf %237, %238 : vector<8x64xf32>
    %240 = arith.truncf %239 : vector<8x64xf32> to vector<8x64xbf16>
    %cst_105 = arith.constant dense<0.000000e+00> : vector<8x32xf32>
    %241 = tpu.matmul %240, %92, %cst_105 {dimension_numbers = #tpu.dot_dimension_numbers<[1], [1], [0], [0], [0, 0, 1, 0], [], []>} : vector<8x64xbf16>, vector<32x64xbf16>, vector<8x32xf32> -> vector<8x32xf32>
    %242 = vector.broadcast %93 : vector<1x32xf32> to vector<8x32xf32>
    %243 = arith.addf %241, %242 : vector<8x32xf32>
    %244 = vector.extract_strided_slice %88 {offsets = [16, 0], sizes = [8, 32], strides = [1, 1]} : vector<32x32xf32> to vector<8x32xf32>
    %245 = arith.addf %243, %244 : vector<8x32xf32>
    %cst_106 = arith.constant dense<0.000000e+00> : vector<8xf32>
    %246 = vector.multi_reduction <add>, %245, %cst_106 [1] : vector<8x32xf32> to vector<8xf32>
    %247 = vector.shape_cast %246 : vector<8xf32> to vector<8x1xf32>
    %cst_107 = arith.constant 3.200000e+01 : f32
    %248 = vector.broadcast %cst_107 : f32 to vector<8x1xf32>
    %249 = arith.divf %247, %248 : vector<8x1xf32>
    %250 = vector.broadcast %249 : vector<8x1xf32> to vector<8x32xf32>
    %251 = arith.subf %245, %250 : vector<8x32xf32>
    %252 = arith.mulf %251, %251 : vector<8x32xf32>
    %cst_108 = arith.constant dense<0.000000e+00> : vector<8xf32>
    %253 = vector.multi_reduction <add>, %252, %cst_108 [1] : vector<8x32xf32> to vector<8xf32>
    %254 = vector.shape_cast %253 : vector<8xf32> to vector<8x1xf32>
    %cst_109 = arith.constant 3.200000e+01 : f32
    %255 = vector.broadcast %cst_109 : f32 to vector<8x1xf32>
    %256 = arith.divf %254, %255 : vector<8x1xf32>
    %cst_110 = arith.constant 9.99999997E-7 : f32
    %257 = vector.broadcast %cst_110 : f32 to vector<8x1xf32>
    %258 = arith.addf %256, %257 : vector<8x1xf32>
    %259 = math.rsqrt %258 : vector<8x1xf32>
    %260 = vector.broadcast %259 : vector<8x1xf32> to vector<8x32xf32>
    %261 = arith.mulf %251, %260 : vector<8x32xf32>
    %262 = vector.broadcast %96 : vector<1x32xf32> to vector<8x32xf32>
    %263 = arith.mulf %261, %262 : vector<8x32xf32>
    %264 = vector.broadcast %97 : vector<1x32xf32> to vector<8x32xf32>
    %265 = arith.addf %263, %264 : vector<8x32xf32>
    %c0_111 = arith.constant 0 : index
    %c16 = arith.constant 16 : index
    %c0_112 = arith.constant 0 : index
    %266 = vector.load %arg16[%c0_111, %c16, %c0_112] : memref<1x32x32xf32, #tpu.memory_space<vmem>>, vector<1x8x32xf32>
    %267 = vector.shape_cast %266 : vector<1x8x32xf32> to vector<8x32xf32>
    %268 = vector.shape_cast %265 : vector<8x32xf32> to vector<1x8x32xf32>
    tpu.vector_store %arg16[%c0_111, %c16, %c0_112], %268 {strides = array<i32>} : memref<1x32x32xf32, #tpu.memory_space<vmem>>, vector<1x8x32xf32>,
    %269 = vector.extract_strided_slice %89 {offsets = [24, 0], sizes = [8, 32], strides = [1, 1]} : vector<32x32xbf16> to vector<8x32xbf16>
    %cst_113 = arith.constant dense<0.000000e+00> : vector<8x64xf32>
    %270 = tpu.matmul %269, %90, %cst_113 {dimension_numbers = #tpu.dot_dimension_numbers<[1], [1], [0], [0], [0, 0, 1, 0], [], []>} : vector<8x32xbf16>, vector<64x32xbf16>, vector<8x64xf32> -> vector<8x64xf32>
    %271 = vector.broadcast %91 : vector<1x64xf32> to vector<8x64xf32>
    %272 = arith.addf %270, %271 : vector<8x64xf32>
    %273 = vector.extract_strided_slice %94 {offsets = [3, 0], sizes = [1, 64], strides = [1, 1]} : vector<4x64xf32> to vector<1x64xf32>
    %274 = vector.extract_strided_slice %95 {offsets = [3, 0], sizes = [1, 64], strides = [1, 1]} : vector<4x64xf32> to vector<1x64xf32>
    %cst_114 = arith.constant dense<0.000000e+00> : vector<8xf32>
    %275 = vector.multi_reduction <add>, %272, %cst_114 [1] : vector<8x64xf32> to vector<8xf32>
    %276 = vector.shape_cast %275 : vector<8xf32> to vector<8x1xf32>
    %cst_115 = arith.constant 6.400000e+01 : f32
    %277 = vector.broadcast %cst_115 : f32 to vector<8x1xf32>
    %278 = arith.divf %276, %277 : vector<8x1xf32>
    %279 = vector.broadcast %278 : vector<8x1xf32> to vector<8x64xf32>
    %280 = arith.subf %272, %279 : vector<8x64xf32>
    %281 = arith.mulf %280, %280 : vector<8x64xf32>
    %cst_116 = arith.constant dense<0.000000e+00> : vector<8xf32>
    %282 = vector.multi_reduction <add>, %281, %cst_116 [1] : vector<8x64xf32> to vector<8xf32>
    %283 = vector.shape_cast %282 : vector<8xf32> to vector<8x1xf32>
    %cst_117 = arith.constant 6.400000e+01 : f32
    %284 = vector.broadcast %cst_117 : f32 to vector<8x1xf32>
    %285 = arith.divf %283, %284 : vector<8x1xf32>
    %cst_118 = arith.constant 9.99999997E-7 : f32
    %286 = vector.broadcast %cst_118 : f32 to vector<8x1xf32>
    %287 = arith.addf %285, %286 : vector<8x1xf32>
    %288 = math.rsqrt %287 : vector<8x1xf32>
    %289 = vector.broadcast %288 : vector<8x1xf32> to vector<8x64xf32>
    %290 = arith.mulf %280, %289 : vector<8x64xf32>
    %291 = vector.broadcast %273 : vector<1x64xf32> to vector<8x64xf32>
    %292 = arith.mulf %290, %291 : vector<8x64xf32>
    %293 = vector.broadcast %274 : vector<1x64xf32> to vector<8x64xf32>
    %294 = arith.addf %292, %293 : vector<8x64xf32>
    %cst_119 = arith.constant 0.000000e+00 : f32
    %295 = vector.broadcast %cst_119 : f32 to vector<8x64xf32>
    %296 = arith.maximumf %294, %295 : vector<8x64xf32>
    %297 = arith.truncf %296 : vector<8x64xf32> to vector<8x64xbf16>
    %cst_120 = arith.constant dense<0.000000e+00> : vector<8x32xf32>
    %298 = tpu.matmul %297, %92, %cst_120 {dimension_numbers = #tpu.dot_dimension_numbers<[1], [1], [0], [0], [0, 0, 1, 0], [], []>} : vector<8x64xbf16>, vector<32x64xbf16>, vector<8x32xf32> -> vector<8x32xf32>
    %299 = vector.broadcast %93 : vector<1x32xf32> to vector<8x32xf32>
    %300 = arith.addf %298, %299 : vector<8x32xf32>
    %301 = vector.extract_strided_slice %88 {offsets = [24, 0], sizes = [8, 32], strides = [1, 1]} : vector<32x32xf32> to vector<8x32xf32>
    %302 = arith.addf %300, %301 : vector<8x32xf32>
    %cst_121 = arith.constant dense<0.000000e+00> : vector<8xf32>
    %303 = vector.multi_reduction <add>, %302, %cst_121 [1] : vector<8x32xf32> to vector<8xf32>
    %304 = vector.shape_cast %303 : vector<8xf32> to vector<8x1xf32>
    %cst_122 = arith.constant 3.200000e+01 : f32
    %305 = vector.broadcast %cst_122 : f32 to vector<8x1xf32>
    %306 = arith.divf %304, %305 : vector<8x1xf32>
    %307 = vector.broadcast %306 : vector<8x1xf32> to vector<8x32xf32>
    %308 = arith.subf %302, %307 : vector<8x32xf32>
    %309 = arith.mulf %308, %308 : vector<8x32xf32>
    %cst_123 = arith.constant dense<0.000000e+00> : vector<8xf32>
    %310 = vector.multi_reduction <add>, %309, %cst_123 [1] : vector<8x32xf32> to vector<8xf32>
    %311 = vector.shape_cast %310 : vector<8xf32> to vector<8x1xf32>
    %cst_124 = arith.constant 3.200000e+01 : f32
    %312 = vector.broadcast %cst_124 : f32 to vector<8x1xf32>
    %313 = arith.divf %311, %312 : vector<8x1xf32>
    %cst_125 = arith.constant 9.99999997E-7 : f32
    %314 = vector.broadcast %cst_125 : f32 to vector<8x1xf32>
    %315 = arith.addf %313, %314 : vector<8x1xf32>
    %316 = math.rsqrt %315 : vector<8x1xf32>
    %317 = vector.broadcast %316 : vector<8x1xf32> to vector<8x32xf32>
    %318 = arith.mulf %308, %317 : vector<8x32xf32>
    %319 = vector.broadcast %96 : vector<1x32xf32> to vector<8x32xf32>
    %320 = arith.mulf %318, %319 : vector<8x32xf32>
    %321 = vector.broadcast %97 : vector<1x32xf32> to vector<8x32xf32>
    %322 = arith.addf %320, %321 : vector<8x32xf32>
    %c0_126 = arith.constant 0 : index
    %c24 = arith.constant 24 : index
    %c0_127 = arith.constant 0 : index
    %323 = vector.load %arg16[%c0_126, %c24, %c0_127] : memref<1x32x32xf32, #tpu.memory_space<vmem>>, vector<1x8x32xf32>
    %324 = vector.shape_cast %323 : vector<1x8x32xf32> to vector<8x32xf32>
    %325 = vector.shape_cast %322 : vector<8x32xf32> to vector<1x8x32xf32>
    tpu.vector_store %arg16[%c0_126, %c24, %c0_127], %325 {strides = array<i32>} : memref<1x32x32xf32, #tpu.memory_space<vmem>>, vector<1x8x32xf32>,
    return
  }
  func.func @transform_0(%arg0: i32) -> (i32, i32, i32) {
    %c0_i32 = arith.constant 0 : i32
    %c0_i32_0 = arith.constant 0 : i32
    %c0_i32_1 = arith.constant 0 : i32
    return %arg0, %c0_i32, %c0_i32_0 : i32, i32, i32
  }
  func.func @transform_1(%arg0: i32) -> (i32, i32, i32) {
    %c0_i32 = arith.constant 0 : i32
    %c0_i32_0 = arith.constant 0 : i32
    %c0_i32_1 = arith.constant 0 : i32
    %c0_i32_2 = arith.constant 0 : i32
    return %c0_i32, %c0_i32_0, %c0_i32_1 : i32, i32, i32
  }
  func.func @transform_2(%arg0: i32) -> (i32, i32, i32) {
    %c0_i32 = arith.constant 0 : i32
    %c0_i32_0 = arith.constant 0 : i32
    %c0_i32_1 = arith.constant 0 : i32
    %c0_i32_2 = arith.constant 0 : i32
    return %c0_i32, %c0_i32_0, %c0_i32_1 : i32, i32, i32
  }
  func.func @transform_3(%arg0: i32) -> (i32, i32, i32) {
    %c0_i32 = arith.constant 0 : i32
    %c0_i32_0 = arith.constant 0 : i32
    %c0_i32_1 = arith.constant 0 : i32
    %c0_i32_2 = arith.constant 0 : i32
    return %c0_i32, %c0_i32_0, %c0_i32_1 : i32, i32, i32
  }
  func.func @transform_4(%arg0: i32) -> (i32, i32, i32) {
    %c0_i32 = arith.constant 0 : i32
    %c0_i32_0 = arith.constant 0 : i32
    %c0_i32_1 = arith.constant 0 : i32
    %c0_i32_2 = arith.constant 0 : i32
    return %c0_i32, %c0_i32_0, %c0_i32_1 : i32, i32, i32
  }
  func.func @transform_5(%arg0: i32) -> (i32, i32) {
    %c0_i32 = arith.constant 0 : i32
    %c0_i32_0 = arith.constant 0 : i32
    %c0_i32_1 = arith.constant 0 : i32
    return %c0_i32, %c0_i32_0 : i32, i32
  }
  func.func @transform_6(%arg0: i32) -> (i32, i32) {
    %c0_i32 = arith.constant 0 : i32
    %c0_i32_0 = arith.constant 0 : i32
    %c0_i32_1 = arith.constant 0 : i32
    return %c0_i32, %c0_i32_0 : i32, i32
  }
  func.func @transform_7(%arg0: i32) -> (i32, i32) {
    %c0_i32 = arith.constant 0 : i32
    %c0_i32_0 = arith.constant 0 : i32
    %c0_i32_1 = arith.constant 0 : i32
    return %c0_i32, %c0_i32_0 : i32, i32
  }
  func.func @transform_8(%arg0: i32) -> (i32, i32) {
    %c0_i32 = arith.constant 0 : i32
    %c0_i32_0 = arith.constant 0 : i32
    %c0_i32_1 = arith.constant 0 : i32
    return %c0_i32, %c0_i32_0 : i32, i32
  }
  func.func @transform_9(%arg0: i32) -> (i32, i32) {
    %c0_i32 = arith.constant 0 : i32
    %c0_i32_0 = arith.constant 0 : i32
    %c0_i32_1 = arith.constant 0 : i32
    return %c0_i32, %c0_i32_0 : i32, i32
  }
  func.func @transform_10(%arg0: i32) -> (i32, i32) {
    %c0_i32 = arith.constant 0 : i32
    %c0_i32_0 = arith.constant 0 : i32
    %c0_i32_1 = arith.constant 0 : i32
    return %c0_i32, %c0_i32_0 : i32, i32
  }
  func.func @transform_11(%arg0: i32) -> (i32, i32) {
    %c0_i32 = arith.constant 0 : i32
    %c0_i32_0 = arith.constant 0 : i32
    %c0_i32_1 = arith.constant 0 : i32
    return %c0_i32, %c0_i32_0 : i32, i32
  }
  func.func @transform_12(%arg0: i32) -> (i32, i32) {
    %c0_i32 = arith.constant 0 : i32
    %c0_i32_0 = arith.constant 0 : i32
    %c0_i32_1 = arith.constant 0 : i32
    return %c0_i32, %c0_i32_0 : i32, i32
  }
  func.func @transform_13(%arg0: i32) -> (i32, i32) {
    %c0_i32 = arith.constant 0 : i32
    %c0_i32_0 = arith.constant 0 : i32
    %c0_i32_1 = arith.constant 0 : i32
    return %c0_i32, %c0_i32_0 : i32, i32
  }
  func.func @transform_14(%arg0: i32) -> (i32, i32) {
    %c0_i32 = arith.constant 0 : i32
    %c0_i32_0 = arith.constant 0 : i32
    %c0_i32_1 = arith.constant 0 : i32
    return %c0_i32, %c0_i32_0 : i32, i32
  }
  func.func @transform_15(%arg0: i32) -> (i32, i32, i32) {
    %c0_i32 = arith.constant 0 : i32
    %c0_i32_0 = arith.constant 0 : i32
    %c0_i32_1 = arith.constant 0 : i32
    return %arg0, %c0_i32, %c0_i32_0 : i32, i32, i32
  }
}

</mosaic_0001>

<llo_original>
// kernel: tpu_custom_call.1
$region0: #{tpu_custom_call.1}
  #allocation0 [shape = 'u32[]', space=smem, size = 0x4, offset = 0x4, fixed_abs, tag = 'smem constant byte address 0x4 - core index']
  #allocation1 [shape = 'u32[72,128]{1,0:T(1,128)}', space=vmem, size = 0x9000, scoped, tag = 'internal scratch']
  %s0 = inlined_call_operand.vmem [shape: bf16[2,32,32], index: 0, kind: input, shape index: {}]
  %s1 = inlined_call_operand.vmem [shape: bf16[2,16,32], index: 1, kind: input, shape index: {}]
  %s2 = inlined_call_operand.vmem [shape: bf16[2,16,32], index: 2, kind: input, shape index: {}]
  %s3 = inlined_call_operand.vmem [shape: bf16[2,16,32], index: 3, kind: input, shape index: {}]
  %s4 = inlined_call_operand.vmem [shape: bf16[2,32,16], index: 4, kind: input, shape index: {}]
  %s5 = inlined_call_operand.vmem [shape: f32[1,32], index: 5, kind: input, shape index: {}]
  %s6 = inlined_call_operand.hbm [shape: f32[1,32], index: 6, kind: input, shape index: {}]
  %s7 = inlined_call_operand.vmem [shape: bf16[64,32], index: 7, kind: input, shape index: {}]
  %s8 = inlined_call_operand.hbm [shape: f32[1,64], index: 8, kind: input, shape index: {}]
  %s9 = inlined_call_operand.hbm [shape: bf16[32,64], index: 9, kind: input, shape index: {}]
  %s10 = inlined_call_operand.hbm [shape: f32[1,32], index: 10, kind: input, shape index: {}]
  %s11 = inlined_call_operand.vmem [shape: f32[4,64], index: 11, kind: input, shape index: {}]
  %s12 = inlined_call_operand.vmem [shape: f32[4,64], index: 12, kind: input, shape index: {}]
  %s13 = inlined_call_operand.vmem [shape: f32[1,32], index: 13, kind: input, shape index: {}]
  %s14 = inlined_call_operand.vmem [shape: f32[1,32], index: 14, kind: input, shape index: {}]
  %s15 = inlined_call_operand.hbm [shape: f32[2,32,32], index: 15, kind: output, shape index: {}]
  %s16 = sld [smem:[#allocation0]]
  $region109: #{tpu_custom_call.1} parent=0
    _
  %s18 = ssub.s32 1, %s16
  %s19 = scalar_select 0, %s18, %s16
  $region1: #{tpu_custom_call.1} parent=0
    #allocation2 [shape = 'u8[512]{0}', space=vmem, size = 0x400, scoped, tag = 'input window, operand 6, single buffered']
    #allocation3 [shape = 's32[2]{0}', space=sflag, size = 0x8, scoped, tag = 'scoped memory for tpu_custom_call.1']
    #allocation4 [shape = 's32[2]{0}', space=sflag, size = 0x8, scoped, tag = 'scoped memory for tpu_custom_call.1']
    #allocation5 [shape = 'u8[512]{0}', space=vmem, size = 0x400, scoped, tag = 'input window, operand 8, single buffered']
    #allocation6 [shape = 's32[1]{0}', space=sflag, size = 0x4, scoped, tag = 'scoped memory for tpu_custom_call.1']
    #allocation7 [shape = 'u8[8192]{0}', space=vmem, size = 0x2000, scoped, tag = 'input window, operand 9, single buffered']
    #allocation8 [shape = 'u8[512]{0}', space=vmem, size = 0x400, scoped, tag = 'input window, operand 10, single buffered']
    #allocation9 [shape = 's32[1]{0}', space=sflag, size = 0x4, scoped, tag = 'scoped memory for tpu_custom_call.1']
    #allocation10 [shape = 'u8[32768]{0}', space=vmem, size = 0x8000, scoped, tag = 'output window, operand 0']
    %20 = vsyncpa [#allocation3], 0
    %21 = vsyncpa [#allocation6], 0
    %22 = vsyncpa [#allocation9], 0
    %23 = vsyncpa [#allocation4], 0
    %s24 = scalar_lea.sflag [#allocation4], 1
    %25 = vsyncpa %s24, 0
    loop: start=0, step=1, limit=4
    $region2: #{tpu_custom_call.1} parent=1 // loop_pre_header
      _
    $region3: #{tpu_custom_call.1} parent=1 // loop_header
      %s27 = sphi 0, %s31
      %p28 = scmp.ge.s32.totalorder %s27, 4
      %s37 = sphi 0, %s39
      %s40 = sphi 0, %s37
      %s41 = sphi 0, %s40
      %s57 = sphi 0, %s41
      %s61 = sphi 0, %s61
      %s63 = sphi 0, %s61
      %s64 = sphi 0, %s63
      %s78 = sphi 0, %s64
      %s82 = sphi 0, %s82
      %s84 = sphi 0, %s82
      %s85 = sphi 0, %s84
      %s99 = sphi 0, %s85
      %s103 = sphi 0, %s103
      %s105 = sphi 0, %s103
      %s106 = sphi 0, %s105
      %s120 = sphi 0, %s106
      %s124 = sphi 0, %s124
      %s126 = sphi 0, %s124
      %s127 = sphi 0, %s126
      %s141 = sphi 0, %s127
      %s145 = sphi 0, %s145
      %s147 = sphi 0, %s145
      %s148 = sphi 0, %s147
      %s162 = sphi 0, %s148
      %s166 = sphi 0, %s166
      %s168 = sphi 0, %s166
      %s169 = sphi 0, %s168
      %s183 = sphi 0, %s169
      %s187 = sphi 0, %s187
      %s189 = sphi 0, %s187
      %s190 = sphi 0, %s189
      %s204 = sphi 0, %s190
      %s208 = sphi 0, %s208
      %s210 = sphi 0, %s208
      %s211 = sphi 0, %s210
      %s225 = sphi 0, %s211
      %s229 = sphi 0, %s229
      %s231 = sphi 0, %s229
      %s232 = sphi 0, %s231
      %s246 = sphi 0, %s232
      %s250 = sphi 0, %s250
      %s252 = sphi 0, %s250
      %s253 = sphi 0, %s252
      %s267 = sphi 0, %s253
      %s271 = sphi 0, %s271
      %s273 = sphi 0, %s271
      %s274 = sphi 0, %s273
      %s288 = sphi 0, %s274
      %s292 = sphi 0, %s292
      %s294 = sphi 0, %s292
      %s295 = sphi 0, %s294
      %s309 = sphi 0, %s295
      %s313 = sphi 0, %s313
      %s315 = sphi 0, %s313
      %s316 = sphi 0, %s315
      %s330 = sphi 0, %s316
      %s334 = sphi 0, %s334
      %s336 = sphi 0, %s334
      %s337 = sphi 0, %s336
      %s351 = sphi 0, %s337
      %s357 = sphi 0, %s359
      %s360 = sphi 0, %s357
      %s361 = sphi 0, %s360
      %s377 = sphi 0, %s361
    $region4: #{tpu_custom_call.1} parent=1 // loop_header_branch
      %30 = sbr.rel (%p28) target = $region8
    $region5: #{tpu_custom_call.1} parent=1 // loop_body
      %s32 = ssub.s32 %s27, 1
      %s33 = ssub.s32 %s27, 2
      %s34 = sadd.s32 %s27, 1
      %s35 = ssub.s32 %s27, %s34
      %p36 = scmp.eq.s32.totalorder %s35, 0
      %s38 = sadd.s32 %s37, 1
      %s39 = scalar_select %p36, %s37, %s38
      %p42 = pneg %p36
      %p43 = scmp.eq.s32.totalorder %s27, 1
      %p44 = por %p42, %p43
      %p45 = scmp.ne.s32.totalorder %s37, %s40
      %p46 = scmp.eq.s32.totalorder %s27, 0
      %p47 = por %p45, %p46
      %p48 = scmp.ne.s32.totalorder %s37, %s40
      %p49 = scmp.eq.s32.totalorder %s32, 1
      %p50 = por %p48, %p49
      %p51 = scmp.ne.s32.totalorder %s40, %s41
      %p52 = scmp.eq.s32.totalorder %s32, 0
      %p53 = por %p51, %p52
      %p54 = scmp.ne.s32.totalorder %s40, %s41
      %p55 = scmp.eq.s32.totalorder %s33, 1
      %p56 = por %p54, %p55
      %p58 = scmp.ne.s32.totalorder %s41, %s57
      %p59 = scmp.eq.s32.totalorder %s33, 0
      %p60 = por %p58, %p59
      %s62 = sadd.s32 %s61, 1
      %p65 = scmp.eq.s32.totalorder %s27, 1
      %p66 = scmp.ne.s32.totalorder %s61, %s63
      %p67 = scmp.eq.s32.totalorder %s27, 0
      %p68 = por %p66, %p67
      %p69 = scmp.ne.s32.totalorder %s61, %s63
      %p70 = scmp.eq.s32.totalorder %s32, 1
      %p71 = por %p69, %p70
      %p72 = scmp.ne.s32.totalorder %s63, %s64
      %p73 = scmp.eq.s32.totalorder %s32, 0
      %p74 = por %p72, %p73
      %p75 = scmp.ne.s32.totalorder %s63, %s64
      %p76 = scmp.eq.s32.totalorder %s33, 1
      %p77 = por %p75, %p76
      %p79 = scmp.ne.s32.totalorder %s64, %s78
      %p80 = scmp.eq.s32.totalorder %s33, 0
      %p81 = por %p79, %p80
      %s83 = sadd.s32 %s82, 1
      %p86 = scmp.eq.s32.totalorder %s27, 1
      %p87 = scmp.ne.s32.totalorder %s82, %s84
      %p88 = scmp.eq.s32.totalorder %s27, 0
      %p89 = por %p87, %p88
      %p90 = scmp.ne.s32.totalorder %s82, %s84
      %p91 = scmp.eq.s32.totalorder %s32, 1
      %p92 = por %p90, %p91
      %p93 = scmp.ne.s32.totalorder %s84, %s85
      %p94 = scmp.eq.s32.totalorder %s32, 0
      %p95 = por %p93, %p94
      %p96 = scmp.ne.s32.totalorder %s84, %s85
      %p97 = scmp.eq.s32.totalorder %s33, 1
      %p98 = por %p96, %p97
      %p100 = scmp.ne.s32.totalorder %s85, %s99
      %p101 = scmp.eq.s32.totalorder %s33, 0
      %p102 = por %p100, %p101
      %s104 = sadd.s32 %s103, 1
      %p107 = scmp.eq.s32.totalorder %s27, 1
      %p108 = scmp.ne.s32.totalorder %s103, %s105
      %p109 = scmp.eq.s32.totalorder %s27, 0
      %p110 = por %p108, %p109
      %p111 = scmp.ne.s32.totalorder %s103, %s105
      %p112 = scmp.eq.s32.totalorder %s32, 1
      %p113 = por %p111, %p112
      %p114 = scmp.ne.s32.totalorder %s105, %s106
      %p115 = scmp.eq.s32.totalorder %s32, 0
      %p116 = por %p114, %p115
      %p117 = scmp.ne.s32.totalorder %s105, %s106
      %p118 = scmp.eq.s32.totalorder %s33, 1
      %p119 = por %p117, %p118
      %p121 = scmp.ne.s32.totalorder %s106, %s120
      %p122 = scmp.eq.s32.totalorder %s33, 0
      %p123 = por %p121, %p122
      %s125 = sadd.s32 %s124, 1
      %p128 = scmp.eq.s32.totalorder %s27, 1
      %p129 = scmp.ne.s32.totalorder %s124, %s126
      %p130 = scmp.eq.s32.totalorder %s27, 0
      %p131 = por %p129, %p130
      %p132 = scmp.ne.s32.totalorder %s124, %s126
      %p133 = scmp.eq.s32.totalorder %s32, 1
      %p134 = por %p132, %p133
      %p135 = scmp.ne.s32.totalorder %s126, %s127
      %p136 = scmp.eq.s32.totalorder %s32, 0
      %p137 = por %p135, %p136
      %p138 = scmp.ne.s32.totalorder %s126, %s127
      %p139 = scmp.eq.s32.totalorder %s33, 1
      %p140 = por %p138, %p139
      %p142 = scmp.ne.s32.totalorder %s127, %s141
      %p143 = scmp.eq.s32.totalorder %s33, 0
      %p144 = por %p142, %p143
      %s146 = sadd.s32 %s145, 1
      %p149 = scmp.eq.s32.totalorder %s27, 1
      %p150 = scmp.ne.s32.totalorder %s145, %s147
      %p151 = scmp.eq.s32.totalorder %s27, 0
      %p152 = por %p150, %p151
      %p153 = scmp.ne.s32.totalorder %s145, %s147
      %p154 = scmp.eq.s32.totalorder %s32, 1
      %p155 = por %p153, %p154
      %p156 = scmp.ne.s32.totalorder %s147, %s148
      %p157 = scmp.eq.s32.totalorder %s32, 0
      %p158 = por %p156, %p157
      %p159 = scmp.ne.s32.totalorder %s147, %s148
      %p160 = scmp.eq.s32.totalorder %s33, 1
      %p161 = por %p159, %p160
      %p163 = scmp.ne.s32.totalorder %s148, %s162
      %p164 = scmp.eq.s32.totalorder %s33, 0
      %p165 = por %p163, %p164
      %s167 = sadd.s32 %s166, 1
      %p170 = scmp.eq.s32.totalorder %s27, 1
      %p171 = scmp.ne.s32.totalorder %s166, %s168
      %p172 = scmp.eq.s32.totalorder %s27, 0
      %p173 = por %p171, %p172
      %p174 = scmp.ne.s32.totalorder %s166, %s168
      %p175 = scmp.eq.s32.totalorder %s32, 1
      %p176 = por %p174, %p175
      %p177 = scmp.ne.s32.totalorder %s168, %s169
      %p178 = scmp.eq.s32.totalorder %s32, 0
      %p179 = por %p177, %p178
      %p180 = scmp.ne.s32.totalorder %s168, %s169
      %p181 = scmp.eq.s32.totalorder %s33, 1
      %p182 = por %p180, %p181
      %p184 = scmp.ne.s32.totalorder %s169, %s183
      %p185 = scmp.eq.s32.totalorder %s33, 0
      %p186 = por %p184, %p185
      %s188 = sadd.s32 %s187, 1
      %p191 = scmp.eq.s32.totalorder %s27, 1
      %p192 = scmp.ne.s32.totalorder %s187, %s189
      %p193 = scmp.eq.s32.totalorder %s27, 0
      %p194 = por %p192, %p193
      %p195 = scmp.ne.s32.totalorder %s187, %s189
      %p196 = scmp.eq.s32.totalorder %s32, 1
      %p197 = por %p195, %p196
      %p198 = scmp.ne.s32.totalorder %s189, %s190
      %p199 = scmp.eq.s32.totalorder %s32, 0
      %p200 = por %p198, %p199
      %p201 = scmp.ne.s32.totalorder %s189, %s190
      %p202 = scmp.eq.s32.totalorder %s33, 1
      %p203 = por %p201, %p202
      %p205 = scmp.ne.s32.totalorder %s190, %s204
      %p206 = scmp.eq.s32.totalorder %s33, 0
      %p207 = por %p205, %p206
      %s209 = sadd.s32 %s208, 1
      %p212 = scmp.eq.s32.totalorder %s27, 1
      %p213 = scmp.ne.s32.totalorder %s208, %s210
      %p214 = scmp.eq.s32.totalorder %s27, 0
      %p215 = por %p213, %p214
      %p216 = scmp.ne.s32.totalorder %s208, %s210
      %p217 = scmp.eq.s32.totalorder %s32, 1
      %p218 = por %p216, %p217
      %p219 = scmp.ne.s32.totalorder %s210, %s211
      %p220 = scmp.eq.s32.totalorder %s32, 0
      %p221 = por %p219, %p220
      %p222 = scmp.ne.s32.totalorder %s210, %s211
      %p223 = scmp.eq.s32.totalorder %s33, 1
      %p224 = por %p222, %p223
      %p226 = scmp.ne.s32.totalorder %s211, %s225
      %p227 = scmp.eq.s32.totalorder %s33, 0
      %p228 = por %p226, %p227
      %s230 = sadd.s32 %s229, 1
      %p233 = scmp.eq.s32.totalorder %s27, 1
      %p234 = scmp.ne.s32.totalorder %s229, %s231
      %p235 = scmp.eq.s32.totalorder %s27, 0
      %p236 = por %p234, %p235
      %p237 = scmp.ne.s32.totalorder %s229, %s231
      %p238 = scmp.eq.s32.totalorder %s32, 1
      %p239 = por %p237, %p238
      %p240 = scmp.ne.s32.totalorder %s231, %s232
      %p241 = scmp.eq.s32.totalorder %s32, 0
      %p242 = por %p240, %p241
      %p243 = scmp.ne.s32.totalorder %s231, %s232
      %p244 = scmp.eq.s32.totalorder %s33, 1
      %p245 = por %p243, %p244
      %p247 = scmp.ne.s32.totalorder %s232, %s246
      %p248 = scmp.eq.s32.totalorder %s33, 0
      %p249 = por %p247, %p248
      %s251 = sadd.s32 %s250, 1
      %p254 = scmp.eq.s32.totalorder %s27, 1
      %p255 = scmp.ne.s32.totalorder %s250, %s252
      %p256 = scmp.eq.s32.totalorder %s27, 0
      %p257 = por %p255, %p256
      %p258 = scmp.ne.s32.totalorder %s250, %s252
      %p259 = scmp.eq.s32.totalorder %s32, 1
      %p260 = por %p258, %p259
      %p261 = scmp.ne.s32.totalorder %s252, %s253
      %p262 = scmp.eq.s32.totalorder %s32, 0
      %p263 = por %p261, %p262
      %p264 = scmp.ne.s32.totalorder %s252, %s253
      %p265 = scmp.eq.s32.totalorder %s33, 1
      %p266 = por %p264, %p265
      %p268 = scmp.ne.s32.totalorder %s253, %s267
      %p269 = scmp.eq.s32.totalorder %s33, 0
      %p270 = por %p268, %p269
      %s272 = sadd.s32 %s271, 1
      %p275 = scmp.eq.s32.totalorder %s27, 1
      %p276 = scmp.ne.s32.totalorder %s271, %s273
      %p277 = scmp.eq.s32.totalorder %s27, 0
      %p278 = por %p276, %p277
      %p279 = scmp.ne.s32.totalorder %s271, %s273
      %p280 = scmp.eq.s32.totalorder %s32, 1
      %p281 = por %p279, %p280
      %p282 = scmp.ne.s32.totalorder %s273, %s274
      %p283 = scmp.eq.s32.totalorder %s32, 0
      %p284 = por %p282, %p283
      %p285 = scmp.ne.s32.totalorder %s273, %s274
      %p286 = scmp.eq.s32.totalorder %s33, 1
      %p287 = por %p285, %p286
      %p289 = scmp.ne.s32.totalorder %s274, %s288
      %p290 = scmp.eq.s32.totalorder %s33, 0
      %p291 = por %p289, %p290
      %s293 = sadd.s32 %s292, 1
      %p296 = scmp.eq.s32.totalorder %s27, 1
      %p297 = scmp.ne.s32.totalorder %s292, %s294
      %p298 = scmp.eq.s32.totalorder %s27, 0
      %p299 = por %p297, %p298
      %p300 = scmp.ne.s32.totalorder %s292, %s294
      %p301 = scmp.eq.s32.totalorder %s32, 1
      %p302 = por %p300, %p301
      %p303 = scmp.ne.s32.totalorder %s294, %s295
      %p304 = scmp.eq.s32.totalorder %s32, 0
      %p305 = por %p303, %p304
      %p306 = scmp.ne.s32.totalorder %s294, %s295
      %p307 = scmp.eq.s32.totalorder %s33, 1
      %p308 = por %p306, %p307
      %p310 = scmp.ne.s32.totalorder %s295, %s309
      %p311 = scmp.eq.s32.totalorder %s33, 0
      %p312 = por %p310, %p311
      %s314 = sadd.s32 %s313, 1
      %p317 = scmp.eq.s32.totalorder %s27, 1
      %p318 = scmp.ne.s32.totalorder %s313, %s315
      %p319 = scmp.eq.s32.totalorder %s27, 0
      %p320 = por %p318, %p319
      %p321 = scmp.ne.s32.totalorder %s313, %s315
      %p322 = scmp.eq.s32.totalorder %s32, 1
      %p323 = por %p321, %p322
      %p324 = scmp.ne.s32.totalorder %s315, %s316
      %p325 = scmp.eq.s32.totalorder %s32, 0
      %p326 = por %p324, %p325
      %p327 = scmp.ne.s32.totalorder %s315, %s316
      %p328 = scmp.eq.s32.totalorder %s33, 1
      %p329 = por %p327, %p328
      %p331 = scmp.ne.s32.totalorder %s316, %s330
      %p332 = scmp.eq.s32.totalorder %s33, 0
      %p333 = por %p331, %p332
      %s335 = sadd.s32 %s334, 1
      %p338 = scmp.eq.s32.totalorder %s27, 1
      %p339 = scmp.ne.s32.totalorder %s334, %s336
      %p340 = scmp.eq.s32.totalorder %s27, 0
      %p341 = por %p339, %p340
      %p342 = scmp.ne.s32.totalorder %s334, %s336
      %p343 = scmp.eq.s32.totalorder %s32, 1
      %p344 = por %p342, %p343
      %p345 = scmp.ne.s32.totalorder %s336, %s337
      %p346 = scmp.eq.s32.totalorder %s32, 0
      %p347 = por %p345, %p346
      %p348 = scmp.ne.s32.totalorder %s336, %s337
      %p349 = scmp.eq.s32.totalorder %s33, 1
      %p350 = por %p348, %p349
      %p352 = scmp.ne.s32.totalorder %s337, %s351
      %p353 = scmp.eq.s32.totalorder %s33, 0
      %p354 = por %p352, %p353
      %s355 = ssub.s32 %s27, %s34
      %p356 = scmp.eq.s32.totalorder %s355, 0
      %s358 = sadd.s32 %s357, 1
      %s359 = scalar_select %p356, %s357, %s358
      %p362 = pneg %p356
      %p363 = scmp.eq.s32.totalorder %s27, 1
      %p364 = por %p362, %p363
      %p365 = scmp.ne.s32.totalorder %s357, %s360
      %p366 = scmp.eq.s32.totalorder %s27, 0
      %p367 = por %p365, %p366
      %p368 = scmp.ne.s32.totalorder %s357, %s360
      %p369 = scmp.eq.s32.totalorder %s32, 1
      %p370 = por %p368, %p369
      %p371 = scmp.ne.s32.totalorder %s360, %s361
      %p372 = scmp.eq.s32.totalorder %s32, 0
      %p373 = por %p371, %p372
      %p374 = scmp.ne.s32.totalorder %s360, %s361
      %p375 = scmp.eq.s32.totalorder %s33, 1
      %p376 = por %p374, %p375
      %p378 = scmp.ne.s32.totalorder %s361, %s377
      %p379 = scmp.eq.s32.totalorder %s33, 0
      %p380 = por %p378, %p379
      %p381 = scmp.le.s32.totalorder 1, %s27
      %p382 = scmp.lt.s32.totalorder %s27, 3
      %p383 = pnand %p381, %p382
      %p384 = pneg %p383
      // Predicated region
      $region9: #{tpu_custom_call.1} parent=5 // pred_check
        _
      $region10: #{tpu_custom_call.1} parent=5 // pred_check_branch
        %386 = sbr.rel (%p383) target = $region12
      $region11: #{tpu_custom_call.1} parent=5 // pred_region
        %s387 = ssub.s32 %s27, 1
        // Predicated region
        $region13: #{tpu_custom_call.1} parent=11 // pred_check
          %p388 = pneg %p74
        $region14: #{tpu_custom_call.1} parent=11 // pred_check_branch
          %390 = sbr.rel (%p388) target = $region16
        $region15: #{tpu_custom_call.1} parent=11 // pred_region
          _
        $region16: #{tpu_custom_call.1} parent=11 // pred_fallthru
          _
        // Predicated region
        $region17: #{tpu_custom_call.1} parent=11 // pred_check
          %p391 = pneg %p95
        $region18: #{tpu_custom_call.1} parent=11 // pred_check_branch
          %393 = sbr.rel (%p391) target = $region20
        $region19: #{tpu_custom_call.1} parent=11 // pred_region
          _
        $region20: #{tpu_custom_call.1} parent=11 // pred_fallthru
          _
        // Predicated region
        $region21: #{tpu_custom_call.1} parent=11 // pred_check
          %p394 = pneg %p116
        $region22: #{tpu_custom_call.1} parent=11 // pred_check_branch
          %396 = sbr.rel (%p394) target = $region24
        $region23: #{tpu_custom_call.1} parent=11 // pred_region
          _
        $region24: #{tpu_custom_call.1} parent=11 // pred_fallthru
          _
        // Predicated region
        $region25: #{tpu_custom_call.1} parent=11 // pred_check
          %p397 = pneg %p137
        $region26: #{tpu_custom_call.1} parent=11 // pred_check_branch
          %399 = sbr.rel (%p397) target = $region28
        $region27: #{tpu_custom_call.1} parent=11 // pred_region
          _
        $region28: #{tpu_custom_call.1} parent=11 // pred_fallthru
          _
        // Predicated region
        $region29: #{tpu_custom_call.1} parent=11 // pred_check
          %p400 = pneg %p158
        $region30: #{tpu_custom_call.1} parent=11 // pred_check_branch
          %402 = sbr.rel (%p400) target = $region32
        $region31: #{tpu_custom_call.1} parent=11 // pred_region
          _
        $region32: #{tpu_custom_call.1} parent=11 // pred_fallthru
          _
        // Predicated region
        $region33: #{tpu_custom_call.1} parent=11 // pred_check
          %p403 = pneg %p179
        $region34: #{tpu_custom_call.1} parent=11 // pred_check_branch
          %405 = sbr.rel (%p403) target = $region36
        $region35: #{tpu_custom_call.1} parent=11 // pred_region
          %407 = vsyncadd [#allocation3], 0
          %s409 = sshll.u32 %s6, 4
          %s410 = int_to_ptr.hbm [resolvable:$true] %s409
          %s411 = sshll.u32 [#allocation2], 4
          %s412 = int_to_ptr.vmem [resolvable:$true] %s411
          %414 = dma.hbm_to_vmem [thread:$0]  %s410, 16, %s412, [#allocation3]
        $region36: #{tpu_custom_call.1} parent=11 // pred_fallthru
          _
        // Predicated region
        $region37: #{tpu_custom_call.1} parent=11 // pred_check
          %p415 = pneg %p200
        $region38: #{tpu_custom_call.1} parent=11 // pred_check_branch
          %417 = sbr.rel (%p415) target = $region40
        $region39: #{tpu_custom_call.1} parent=11 // pred_region
          _
        $region40: #{tpu_custom_call.1} parent=11 // pred_fallthru
          _
        // Predicated region
        $region41: #{tpu_custom_call.1} parent=11 // pred_check
          %p418 = pneg %p221
        $region42: #{tpu_custom_call.1} parent=11 // pred_check_branch
          %420 = sbr.rel (%p418) target = $region44
        $region43: #{tpu_custom_call.1} parent=11 // pred_region
          %422 = vsyncadd [#allocation6], 0
          %s424 = sshll.u32 %s8, 4
          %s425 = int_to_ptr.hbm [resolvable:$true] %s424
          %s426 = sshll.u32 [#allocation5], 4
          %s427 = int_to_ptr.vmem [resolvable:$true] %s426
          %429 = dma.hbm_to_vmem [thread:$0]  %s425, 16, %s427, [#allocation6]
        $region44: #{tpu_custom_call.1} parent=11 // pred_fallthru
          _
        // Predicated region
        $region45: #{tpu_custom_call.1} parent=11 // pred_check
          %p430 = pneg %p242
        $region46: #{tpu_custom_call.1} parent=11 // pred_check_branch
          %432 = sbr.rel (%p430) target = $region48
        $region47: #{tpu_custom_call.1} parent=11 // pred_region
          %434 = vsyncadd [#allocation6], 0
          %s435 = sshll.u32 %s9, 4
          %s436 = int_to_ptr.hbm [resolvable:$true] %s435
          %s437 = sshll.u32 [#allocation7], 4
          %s438 = int_to_ptr.vmem [resolvable:$true] %s437
          %443 = dma.hbm_to_vmem [thread:$0]  %s436, 256, %s438, [#allocation6], 64, 64, 4
        $region48: #{tpu_custom_call.1} parent=11 // pred_fallthru
          _
        // Predicated region
        $region49: #{tpu_custom_call.1} parent=11 // pred_check
          %p444 = pneg %p263
        $region50: #{tpu_custom_call.1} parent=11 // pred_check_branch
          %446 = sbr.rel (%p444) target = $region52
        $region51: #{tpu_custom_call.1} parent=11 // pred_region
          %448 = vsyncadd [#allocation9], 0
          %s450 = sshll.u32 %s10, 4
          %s451 = int_to_ptr.hbm [resolvable:$true] %s450
          %s452 = sshll.u32 [#allocation8], 4
          %s453 = int_to_ptr.vmem [resolvable:$true] %s452
          %455 = dma.hbm_to_vmem [thread:$0]  %s451, 16, %s453, [#allocation9]
        $region52: #{tpu_custom_call.1} parent=11 // pred_fallthru
          _
        // Predicated region
        $region53: #{tpu_custom_call.1} parent=11 // pred_check
          %p456 = pneg %p284
        $region54: #{tpu_custom_call.1} parent=11 // pred_check_branch
          %458 = sbr.rel (%p456) target = $region56
        $region55: #{tpu_custom_call.1} parent=11 // pred_region
          _
        $region56: #{tpu_custom_call.1} parent=11 // pred_fallthru
          _
        // Predicated region
        $region57: #{tpu_custom_call.1} parent=11 // pred_check
          %p459 = pneg %p305
        $region58: #{tpu_custom_call.1} parent=11 // pred_check_branch
          %461 = sbr.rel (%p459) target = $region60
        $region59: #{tpu_custom_call.1} parent=11 // pred_region
          _
        $region60: #{tpu_custom_call.1} parent=11 // pred_fallthru
          _
        // Predicated region
        $region61: #{tpu_custom_call.1} parent=11 // pred_check
          %p462 = pneg %p326
        $region62: #{tpu_custom_call.1} parent=11 // pred_check_branch
          %464 = sbr.rel (%p462) target = $region64
        $region63: #{tpu_custom_call.1} parent=11 // pred_region
          _
        $region64: #{tpu_custom_call.1} parent=11 // pred_fallthru
          _
        // Predicated region
        $region65: #{tpu_custom_call.1} parent=11 // pred_check
          %p465 = pneg %p347
        $region66: #{tpu_custom_call.1} parent=11 // pred_check_branch
          %467 = sbr.rel (%p465) target = $region68
        $region67: #{tpu_custom_call.1} parent=11 // pred_region
          _
        $region68: #{tpu_custom_call.1} parent=11 // pred_fallthru
          _
      $region12: #{tpu_custom_call.1} parent=5 // pred_fallthru
        _
      %p468 = scmp.lt.s32.totalorder %s27, 2
      // Predicated region
      $region69: #{tpu_custom_call.1} parent=5 // pred_check
        %p469 = pneg %p468
      $region70: #{tpu_custom_call.1} parent=5 // pred_check_branch
        %471 = sbr.rel (%p469) target = $region72
      $region71: #{tpu_custom_call.1} parent=5 // pred_region
        // Predicated region
        $region73: #{tpu_custom_call.1} parent=71 // pred_check
          %p472 = pneg %p47
        $region74: #{tpu_custom_call.1} parent=71 // pred_check_branch
          %474 = sbr.rel (%p472) target = $region76
        $region75: #{tpu_custom_call.1} parent=71 // pred_region
          %p475 = scmp.lt.s32.totalorder %s27, 1
          %s476 = scalar_select %p475, %s27, 1
          %s477 = smul.addr %s476, 4
          %s478 = smul.addr %s477, 4
          %s479 = scalar_lea.vmem %s0, %s478
        $region76: #{tpu_custom_call.1} parent=71 // pred_fallthru
          _
      $region72: #{tpu_custom_call.1} parent=5 // pred_fallthru
        _
      %p480 = scmp.le.s32.totalorder 1, %s27
      %p481 = scmp.lt.s32.totalorder %s27, 3
      %p482 = pnand %p480, %p481
      %p483 = pneg %p482
      // Predicated region
      $region77: #{tpu_custom_call.1} parent=5 // pred_check
        _
      $region78: #{tpu_custom_call.1} parent=5 // pred_check_branch
        %485 = sbr.rel (%p482) target = $region80
      $region79: #{tpu_custom_call.1} parent=5 // pred_region
        %s486 = ssub.s32 %s27, 1
        // Predicated region
        $region81: #{tpu_custom_call.1} parent=79 // pred_check
          %p487 = pneg %p179
        $region82: #{tpu_custom_call.1} parent=79 // pred_check_branch
          %489 = sbr.rel (%p487) target = $region84
        $region83: #{tpu_custom_call.1} parent=79 // pred_region
          %491 = dma.done [#allocation3], 16
        $region84: #{tpu_custom_call.1} parent=79 // pred_fallthru
          _
        // Predicated region
        $region85: #{tpu_custom_call.1} parent=79 // pred_check
          %p492 = pneg %p221
        $region86: #{tpu_custom_call.1} parent=79 // pred_check_branch
          %494 = sbr.rel (%p492) target = $region88
        $region87: #{tpu_custom_call.1} parent=79 // pred_region
          %496 = dma.done [#allocation6], 16
        $region88: #{tpu_custom_call.1} parent=79 // pred_fallthru
          _
        // Predicated region
        $region89: #{tpu_custom_call.1} parent=79 // pred_check
          %p497 = pneg %p242
        $region90: #{tpu_custom_call.1} parent=79 // pred_check_branch
          %499 = sbr.rel (%p497) target = $region92
        $region91: #{tpu_custom_call.1} parent=79 // pred_region
          %501 = dma.done [#allocation6], 256
        $region92: #{tpu_custom_call.1} parent=79 // pred_fallthru
          _
        // Predicated region
        $region93: #{tpu_custom_call.1} parent=79 // pred_check
          %p502 = pneg %p263
        $region94: #{tpu_custom_call.1} parent=79 // pred_check_branch
          %504 = sbr.rel (%p502) target = $region96
        $region95: #{tpu_custom_call.1} parent=79 // pred_region
          %506 = dma.done [#allocation9], 16
        $region96: #{tpu_custom_call.1} parent=79 // pred_fallthru
          _
        %p507 = scmp.lt.s32.totalorder %s32, 1
        %s508 = scalar_select %p507, %s32, 1
        %s509 = smul.addr %s508, 4
        %s510 = smul.addr %s509, 4
        %s511 = scalar_lea.vmem %s0, %s510
        %p512 = pneg %p53
        %p513 = pneg %p50
        %p514 = pneg %p74
        %p515 = pneg %p71
        %p516 = pneg %p95
        %p517 = pneg %p92
        %p518 = pneg %p116
        %p519 = pneg %p113
        %p520 = pneg %p137
        %p521 = pneg %p134
        %p522 = pneg %p158
        %p523 = pneg %p155
        %p524 = pneg %p179
        %p525 = pneg %p176
        %p526 = pneg %p200
        %p527 = pneg %p197
        %p528 = pneg %p221
        %p529 = pneg %p218
        %p530 = pneg %p242
        %p531 = pneg %p239
        %p532 = pneg %p263
        %p533 = pneg %p260
        %p534 = pneg %p284
        %p535 = pneg %p281
        %p536 = pneg %p305
        %p537 = pneg %p302
        %p538 = pneg %p326
        %p539 = pneg %p323
        %p540 = pneg %p347
        %p541 = pneg %p344
        %p542 = pneg %p373
        %p543 = pneg %p370
        %s544 = sand.u32 %s360, 1
        %s545 = scalar_lea.sflag [#allocation4], %s544
        %s546 = sand.u32 %s360, 1
        %s547 = smul.addr %s546, 32
        %s548 = scalar_lea.vmem [#allocation10], %s547
        %p549 = scmp.lt.s32.totalorder %s32, 1
        %s550 = scalar_select %p549, %s32, 1
        %s551 = smul.addr %s550, 4
        %s552 = smul.addr %s551, 4
        %s553 = scalar_lea.vmem %s0, %s552
        %v555 = vld [vmem:[%s553] sm:$0xf]
        %v556 = vld [vmem:[%s553 + $0x4] sm:$0xf]
        %v557 = vld [vmem:[%s553 + $0x8] sm:$0xf]
        %v558 = vld [vmem:[%s553 + $0xc] sm:$0xf]
        %v559 = vunpack.c.l.bf16 %v555
        %v560 = vunpack.c.l.bf16 %v556
        %v561 = vunpack.c.l.bf16 %v557
        %v562 = vunpack.c.l.bf16 %v558
        %v563 = vld [vmem:[%s1] sm:$0xf]
        %v564 = vld [vmem:[%s1 + $0x4] sm:$0xf]
        %v569 = vunpack.c.l.b16 %v555
        %v570 = vunpack.c.l.b16 %v556
        %v571 = vunpack.c.l.b16 %v557
        %v572 = vunpack.c.l.b16 %v558
        %v573 = vpack.c.b16 %v570, %v569
        %v574 = vpack.c.b16 %v572, %v571
        %v577 = vunpack.c.l.b16 %v563
        %v578 = vunpack.c.l.b16 %v564
        %v579 = vpack.c.b16 %v578, %v577
        %vm580 = vcmask 261120
        %v582 = vsel %vm580, %v573, 0
        %v585 = vsel %vm580, %v574, 0
        %v588 = vsel %vm580, %v579, 0
        %590 = vmatpush.bf16.xpose.msra.mxu0 0
        %591 = vmatpush.bf16.xpose.msra.mxu0 0
        %592 = vmatpush.bf16.xpose.msra.mxu0 0
        %593 = vmatpush.bf16.xpose.msra.mxu0 0
        %594 = vmatpush.bf16.xpose.msra.mxu0 0
        %595 = vmatpush.bf16.xpose.msra.mxu0 0
        %596 = vmatpush.bf16.xpose.msra.mxu0 0
        %597 = vmatpush.bf16.xpose.msra.mxu0 %v588
        %598 = vmatmul.bf16.gmra.mxu0 %v582
        %v599 = vpop.f32.mrf.mxu0
        %v600 = vadd.f32 0.0, %v599
        %v601 = vpop.f32.mrf.mxu0
        %v602 = vadd.f32 0.0, %v601
        %603 = vmatmul.bf16.gmra.mxu0 %v585
        %v604 = vpop.f32.mrf.mxu0
        %v605 = vadd.f32 0.0, %v604
        %v606 = vpop.f32.mrf.mxu0
        %v607 = vadd.f32 0.0, %v606
        %608 = vdwg.mxu0
        %v609 = vpack.c.bf16 %v602, %v600
        %v610 = vpack.c.bf16 %v607, %v605
        %v611 = vld [vmem:[%s2] sm:$0xf]
        %v612 = vld [vmem:[%s2 + $0x4] sm:$0xf]
        %v615 = vunpack.c.l.b16 %v611
        %v616 = vunpack.c.l.b16 %v612
        %v617 = vpack.c.b16 %v616, %v615
        %v619 = vsel %vm580, %v617, 0
        %621 = vmatpush.bf16.xpose.msra.mxu0 0
        %622 = vmatpush.bf16.xpose.msra.mxu0 0
        %623 = vmatpush.bf16.xpose.msra.mxu0 0
        %624 = vmatpush.bf16.xpose.msra.mxu0 0
        %625 = vmatpush.bf16.xpose.msra.mxu0 0
        %626 = vmatpush.bf16.xpose.msra.mxu0 0
        %627 = vmatpush.bf16.xpose.msra.mxu0 0
        %628 = vmatpush.bf16.xpose.msra.mxu0 %v619
        %629 = vmatmul.bf16.gmra.mxu0 %v582
        %v630 = vpop.f32.mrf.mxu0
        %v631 = vadd.f32 0.0, %v630
        %v632 = vpop.f32.mrf.mxu0
        %v633 = vadd.f32 0.0, %v632
        %634 = vmatmul.bf16.gmra.mxu0 %v585
        %v635 = vpop.f32.mrf.mxu0
        %v636 = vadd.f32 0.0, %v635
        %v637 = vpop.f32.mrf.mxu0
        %v638 = vadd.f32 0.0, %v637
        %639 = vdwg.mxu0
        %v640 = vpack.c.bf16 %v633, %v631
        %v641 = vpack.c.bf16 %v638, %v636
        %v642 = vld [vmem:[%s3] sm:$0xf]
        %v643 = vld [vmem:[%s3 + $0x4] sm:$0xf]
        %v646 = vunpack.c.l.b16 %v642
        %v647 = vunpack.c.l.b16 %v643
        %v648 = vpack.c.b16 %v647, %v646
        %v650 = vsel %vm580, %v648, 0
        %652 = vmatpush.bf16.xpose.msra.mxu0 0
        %653 = vmatpush.bf16.xpose.msra.mxu0 0
        %654 = vmatpush.bf16.xpose.msra.mxu0 0
        %655 = vmatpush.bf16.xpose.msra.mxu0 0
        %656 = vmatpush.bf16.xpose.msra.mxu0 0
        %657 = vmatpush.bf16.xpose.msra.mxu0 0
        %658 = vmatpush.bf16.xpose.msra.mxu0 0
        %659 = vmatpush.bf16.xpose.msra.mxu0 %v650
        %660 = vmatmul.bf16.gmra.mxu0 %v582
        %v661 = vpop.f32.mrf.mxu0
        %v662 = vadd.f32 0.0, %v661
        %v663 = vpop.f32.mrf.mxu0
        %v664 = vadd.f32 0.0, %v663
        %665 = vmatmul.bf16.gmra.mxu0 %v585
        %v666 = vpop.f32.mrf.mxu0
        %v667 = vadd.f32 0.0, %v666
        %v668 = vpop.f32.mrf.mxu0
        %v669 = vadd.f32 0.0, %v668
        %670 = vdwg.mxu0
        %v671 = vpack.c.bf16 %v664, %v662
        %v672 = vpack.c.bf16 %v669, %v667
        %vm673 = vcmask 130048
        %v675 = vsel %vm673, %v609, 0
        %v678 = vsel %vm673, %v610, 0
        %v681 = vsel %vm673, %v640, 0
        %v684 = vsel %vm673, %v641, 0
        %686 = vmatpush.bf16.xpose.msra.mxu0 0
        %687 = vmatpush.bf16.xpose.msra.mxu0 0
        %688 = vmatpush.bf16.xpose.msra.mxu0 0
        %689 = vmatpush.bf16.xpose.msra.mxu0 0
        %690 = vmatpush.bf16.xpose.msra.mxu0 0
        %691 = vmatpush.bf16.xpose.msra.mxu0 0
        %692 = vmatpush.bf16.xpose.msra.mxu0 %v684
        %693 = vmatpush.bf16.xpose.msra.mxu0 %v681
        %694 = vmatmul.bf16.gmra.mxu0 %v675
        %v695 = vpop.f32.mrf.mxu0
        %v696 = vadd.f32 0.0, %v695
        %v697 = vpop.f32.mrf.mxu0
        %v698 = vadd.f32 0.0, %v697
        %699 = vmatmul.bf16.gmra.mxu0 %v678
        %v700 = vpop.f32.mrf.mxu0
        %v701 = vadd.f32 0.0, %v700
        %v702 = vpop.f32.mrf.mxu0
        %v703 = vadd.f32 0.0, %v702
        %704 = vdwg.mxu0
        %v705 = vsel %vm580, %v696, -inf
        %706 = vmax.xlane.f32.xlu0 %v705
        %v707 = vpop.xlane.xlu0 %706
        %v708 = vsel %vm580, %v698, -inf
        %709 = vmax.xlane.f32.xlu0 %v708
        %v710 = vpop.xlane.xlu0 %709
        %v711 = vsel %vm580, %v701, -inf
        %712 = vmax.xlane.f32.xlu0 %v711
        %v713 = vpop.xlane.xlu0 %712
        %v714 = vsel %vm580, %v703, -inf
        %715 = vmax.xlane.f32.xlu0 %v714
        %v716 = vpop.xlane.xlu0 %715
        %v717 = vsub.f32 %v696, %v707
        %v718 = vsub.f32 %v698, %v710
        %v719 = vsub.f32 %v701, %v713
        %v720 = vsub.f32 %v703, %v716
        %v721 = vmul.f32 %v717, 1.442695
        %v722 = vpow.pop %v721
        %v723 = vmul.f32 %v718, 1.442695
        %v724 = vpow.pop %v723
        %v725 = vmul.f32 %v719, 1.442695
        %v726 = vpow.pop %v725
        %v727 = vmul.f32 %v720, 1.442695
        %v728 = vpow.pop %v727
        %v729 = vsel %vm580, %v722, 0.0
        %730 = vadd.xlane.f32.xlu0 %v729
        %v731 = vpop.xlane.xlu0 %730
        %v732 = vsel %vm580, %v724, 0.0
        %733 = vadd.xlane.f32.xlu0 %v732
        %v734 = vpop.xlane.xlu0 %733
        %v735 = vsel %vm580, %v726, 0.0
        %736 = vadd.xlane.f32.xlu0 %v735
        %v737 = vpop.xlane.xlu0 %736
        %v738 = vsel %vm580, %v728, 0.0
        %739 = vadd.xlane.f32.xlu0 %v738
        %v740 = vpop.xlane.xlu0 %739
        %v741 = vrcp.pop %v731
        %v742 = vrcp.pop %v734
        %v743 = vrcp.pop %v737
        %v744 = vrcp.pop %v740
        %v745 = vmul.f32 %v722, %v741
        %v746 = vmul.f32 %v724, %v742
        %v747 = vmul.f32 %v726, %v743
        %v748 = vmul.f32 %v728, %v744
        %v749 = vpack.c.bf16 %v746, %v745
        %v750 = vpack.c.bf16 %v748, %v747
        %v752 = vsel %vm580, %v749, 0
        %v755 = vsel %vm580, %v750, 0
        %757 = vmatpush.bf16.msra.mxu0 0
        %758 = vmatpush.bf16.msra.mxu0 0
        %759 = vmatpush.bf16.msra.mxu0 0
        %760 = vmatpush.bf16.msra.mxu0 0
        %761 = vmatpush.bf16.msra.mxu0 0
        %762 = vmatpush.bf16.msra.mxu0 0
        %763 = vmatpush.bf16.msra.mxu0 %v672
        %764 = vmatpush.bf16.msra.mxu0 %v671
        %765 = vmatmul.bf16.gmra.mxu0 %v752
        %v766 = vpop.f32.mrf.mxu0
        %v767 = vadd.f32 0.0, %v766
        %v768 = vpop.f32.mrf.mxu0
        %v769 = vadd.f32 0.0, %v768
        %770 = vmatmul.bf16.gmra.mxu0 %v755
        %v771 = vpop.f32.mrf.mxu0
        %v772 = vadd.f32 0.0, %v771
        %v773 = vpop.f32.mrf.mxu0
        %v774 = vadd.f32 0.0, %v773
        %775 = vdwg.mxu0
        %v776 = vpack.c.bf16 %v769, %v767
        %v777 = vpack.c.bf16 %v774, %v772
        %v778 = vld [vmem:[%s4] sm:$0xf]
        %v779 = vld [vmem:[%s4 + $0x4] sm:$0xf]
        %v780 = vld [vmem:[%s4 + $0x8] sm:$0xf]
        %v781 = vld [vmem:[%s4 + $0xc] sm:$0xf]
        %s782 = scalar_lea.vmem %s1, 8
        %v783 = vld [vmem:[%s782] sm:$0xf]
        %v784 = vld [vmem:[%s782 + $0x4] sm:$0xf]
        %v787 = vunpack.c.l.b16 %v783
        %v788 = vunpack.c.l.b16 %v784
        %v789 = vpack.c.b16 %v788, %v787
        %v791 = vsel %vm580, %v789, 0
        %793 = vmatpush.bf16.xpose.msra.mxu0 0
        %794 = vmatpush.bf16.xpose.msra.mxu0 0
        %795 = vmatpush.bf16.xpose.msra.mxu0 0
        %796 = vmatpush.bf16.xpose.msra.mxu0 0
        %797 = vmatpush.bf16.xpose.msra.mxu0 0
        %798 = vmatpush.bf16.xpose.msra.mxu0 0
        %799 = vmatpush.bf16.xpose.msra.mxu0 0
        %800 = vmatpush.bf16.xpose.msra.mxu0 %v791
        %801 = vmatmul.bf16.gmra.mxu0 %v582
        %v802 = vpop.f32.mrf.mxu0
        %v803 = vadd.f32 0.0, %v802
        %v804 = vpop.f32.mrf.mxu0
        %v805 = vadd.f32 0.0, %v804
        %806 = vmatmul.bf16.gmra.mxu0 %v585
        %v807 = vpop.f32.mrf.mxu0
        %v808 = vadd.f32 0.0, %v807
        %v809 = vpop.f32.mrf.mxu0
        %v810 = vadd.f32 0.0, %v809
        %811 = vdwg.mxu0
        %v812 = vpack.c.bf16 %v805, %v803
        %v813 = vpack.c.bf16 %v810, %v808
        %s814 = scalar_lea.vmem %s2, 8
        %v815 = vld [vmem:[%s814] sm:$0xf]
        %v816 = vld [vmem:[%s814 + $0x4] sm:$0xf]
        %v819 = vunpack.c.l.b16 %v815
        %v820 = vunpack.c.l.b16 %v816
        %v821 = vpack.c.b16 %v820, %v819
        %v823 = vsel %vm580, %v821, 0
        %825 = vmatpush.bf16.xpose.msra.mxu0 0
        %826 = vmatpush.bf16.xpose.msra.mxu0 0
        %827 = vmatpush.bf16.xpose.msra.mxu0 0
        %828 = vmatpush.bf16.xpose.msra.mxu0 0
        %829 = vmatpush.bf16.xpose.msra.mxu0 0
        %830 = vmatpush.bf16.xpose.msra.mxu0 0
        %831 = vmatpush.bf16.xpose.msra.mxu0 0
        %832 = vmatpush.bf16.xpose.msra.mxu0 %v823
        %833 = vmatmul.bf16.gmra.mxu0 %v582
        %v834 = vpop.f32.mrf.mxu0
        %v835 = vadd.f32 0.0, %v834
        %v836 = vpop.f32.mrf.mxu0
        %v837 = vadd.f32 0.0, %v836
        %838 = vmatmul.bf16.gmra.mxu0 %v585
        %v839 = vpop.f32.mrf.mxu0
        %v840 = vadd.f32 0.0, %v839
        %v841 = vpop.f32.mrf.mxu0
        %v842 = vadd.f32 0.0, %v841
        %843 = vdwg.mxu0
        %v844 = vpack.c.bf16 %v837, %v835
        %v845 = vpack.c.bf16 %v842, %v840
        %s846 = scalar_lea.vmem %s3, 8
        %v847 = vld [vmem:[%s846] sm:$0xf]
        %v848 = vld [vmem:[%s846 + $0x4] sm:$0xf]
        %v851 = vunpack.c.l.b16 %v847
        %v852 = vunpack.c.l.b16 %v848
        %v853 = vpack.c.b16 %v852, %v851
        %v855 = vsel %vm580, %v853, 0
        %857 = vmatpush.bf16.xpose.msra.mxu0 0
        %858 = vmatpush.bf16.xpose.msra.mxu0 0
        %859 = vmatpush.bf16.xpose.msra.mxu0 0
        %860 = vmatpush.bf16.xpose.msra.mxu0 0
        %861 = vmatpush.bf16.xpose.msra.mxu0 0
        %862 = vmatpush.bf16.xpose.msra.mxu0 0
        %863 = vmatpush.bf16.xpose.msra.mxu0 0
        %864 = vmatpush.bf16.xpose.msra.mxu0 %v855
        %865 = vmatmul.bf16.gmra.mxu0 %v582
        %v866 = vpop.f32.mrf.mxu0
        %v867 = vadd.f32 0.0, %v866
        %v868 = vpop.f32.mrf.mxu0
        %v869 = vadd.f32 0.0, %v868
        %870 = vmatmul.bf16.gmra.mxu0 %v585
        %v871 = vpop.f32.mrf.mxu0
        %v872 = vadd.f32 0.0, %v871
        %v873 = vpop.f32.mrf.mxu0
        %v874 = vadd.f32 0.0, %v873
        %875 = vdwg.mxu0
        %v876 = vpack.c.bf16 %v869, %v867
        %v877 = vpack.c.bf16 %v874, %v872
        %v879 = vsel %vm673, %v812, 0
        %v882 = vsel %vm673, %v813, 0
        %v885 = vsel %vm673, %v844, 0
        %v888 = vsel %vm673, %v845, 0
        %890 = vmatpush.bf16.xpose.msra.mxu0 0
        %891 = vmatpush.bf16.xpose.msra.mxu0 0
        %892 = vmatpush.bf16.xpose.msra.mxu0 0
        %893 = vmatpush.bf16.xpose.msra.mxu0 0
        %894 = vmatpush.bf16.xpose.msra.mxu0 0
        %895 = vmatpush.bf16.xpose.msra.mxu0 0
        %896 = vmatpush.bf16.xpose.msra.mxu0 %v888
        %897 = vmatpush.bf16.xpose.msra.mxu0 %v885
        %898 = vmatmul.bf16.gmra.mxu0 %v879
        %v899 = vpop.f32.mrf.mxu0
        %v900 = vadd.f32 0.0, %v899
        %v901 = vpop.f32.mrf.mxu0
        %v902 = vadd.f32 0.0, %v901
        %903 = vmatmul.bf16.gmra.mxu0 %v882
        %v904 = vpop.f32.mrf.mxu0
        %v905 = vadd.f32 0.0, %v904
        %v906 = vpop.f32.mrf.mxu0
        %v907 = vadd.f32 0.0, %v906
        %908 = vdwg.mxu0
        %v909 = vsel %vm580, %v900, -inf
        %910 = vmax.xlane.f32.xlu0 %v909
        %v911 = vpop.xlane.xlu0 %910
        %v912 = vsel %vm580, %v902, -inf
        %913 = vmax.xlane.f32.xlu0 %v912
        %v914 = vpop.xlane.xlu0 %913
        %v915 = vsel %vm580, %v905, -inf
        %916 = vmax.xlane.f32.xlu0 %v915
        %v917 = vpop.xlane.xlu0 %916
        %v918 = vsel %vm580, %v907, -inf
        %919 = vmax.xlane.f32.xlu0 %v918
        %v920 = vpop.xlane.xlu0 %919
        %v921 = vsub.f32 %v900, %v911
        %v922 = vsub.f32 %v902, %v914
        %v923 = vsub.f32 %v905, %v917
        %v924 = vsub.f32 %v907, %v920
        %v925 = vmul.f32 %v921, 1.442695
        %v926 = vpow.pop %v925
        %v927 = vmul.f32 %v922, 1.442695
        %v928 = vpow.pop %v927
        %v929 = vmul.f32 %v923, 1.442695
        %v930 = vpow.pop %v929
        %v931 = vmul.f32 %v924, 1.442695
        %v932 = vpow.pop %v931
        %v933 = vsel %vm580, %v926, 0.0
        %934 = vadd.xlane.f32.xlu0 %v933
        %v935 = vpop.xlane.xlu0 %934
        %v936 = vsel %vm580, %v928, 0.0
        %937 = vadd.xlane.f32.xlu0 %v936
        %v938 = vpop.xlane.xlu0 %937
        %v939 = vsel %vm580, %v930, 0.0
        %940 = vadd.xlane.f32.xlu0 %v939
        %v941 = vpop.xlane.xlu0 %940
        %v942 = vsel %vm580, %v932, 0.0
        %943 = vadd.xlane.f32.xlu0 %v942
        %v944 = vpop.xlane.xlu0 %943
        %v945 = vrcp.pop %v935
        %v946 = vrcp.pop %v938
        %v947 = vrcp.pop %v941
        %v948 = vrcp.pop %v944
        %v949 = vmul.f32 %v926, %v945
        %v950 = vmul.f32 %v928, %v946
        %v951 = vmul.f32 %v930, %v947
        %v952 = vmul.f32 %v932, %v948
        %v953 = vpack.c.bf16 %v950, %v949
        %v954 = vpack.c.bf16 %v952, %v951
        %v956 = vsel %vm580, %v953, 0
        %v959 = vsel %vm580, %v954, 0
        %961 = vmatpush.bf16.msra.mxu0 0
        %962 = vmatpush.bf16.msra.mxu0 0
        %963 = vmatpush.bf16.msra.mxu0 0
        %964 = vmatpush.bf16.msra.mxu0 0
        %965 = vmatpush.bf16.msra.mxu0 0
        %966 = vmatpush.bf16.msra.mxu0 0
        %967 = vmatpush.bf16.msra.mxu0 %v877
        %968 = vmatpush.bf16.msra.mxu0 %v876
        %969 = vmatmul.bf16.gmra.mxu0 %v956
        %v970 = vpop.f32.mrf.mxu0
        %v971 = vadd.f32 0.0, %v970
        %v972 = vpop.f32.mrf.mxu0
        %v973 = vadd.f32 0.0, %v972
        %974 = vmatmul.bf16.gmra.mxu0 %v959
        %v975 = vpop.f32.mrf.mxu0
        %v976 = vadd.f32 0.0, %v975
        %v977 = vpop.f32.mrf.mxu0
        %v978 = vadd.f32 0.0, %v977
        %979 = vdwg.mxu0
        %v980 = vpack.c.bf16 %v973, %v971
        %v981 = vpack.c.bf16 %v978, %v976
        %s982 = scalar_lea.vmem %s4, 16
        %v983 = vld [vmem:[%s982] sm:$0xf]
        %v984 = vld [vmem:[%s982 + $0x4] sm:$0xf]
        %v985 = vld [vmem:[%s982 + $0x8] sm:$0xf]
        %v986 = vld [vmem:[%s982 + $0xc] sm:$0xf]
        %v991 = vunpack.c.l.b16 %v983
        %v992 = vunpack.c.l.b16 %v984
        %v993 = vunpack.c.l.b16 %v985
        %v994 = vunpack.c.l.b16 %v986
        %v995 = vpack.c.b16 %v992, %v991
        %v996 = vpack.c.b16 %v994, %v993
        %v998 = vsel %vm673, %v980, 0
        %v1001 = vsel %vm673, %v981, 0
        %v1004 = vsel %vm673, %v995, 0
        %v1007 = vsel %vm673, %v996, 0
        %1009 = vmatpush.bf16.xpose.msra.mxu0 0
        %1010 = vmatpush.bf16.xpose.msra.mxu0 0
        %1011 = vmatpush.bf16.xpose.msra.mxu0 0
        %1012 = vmatpush.bf16.xpose.msra.mxu0 0
        %1013 = vmatpush.bf16.xpose.msra.mxu0 0
        %1014 = vmatpush.bf16.xpose.msra.mxu0 0
        %1015 = vmatpush.bf16.xpose.msra.mxu0 %v1007
        %1016 = vmatpush.bf16.xpose.msra.mxu0 %v1004
        %1017 = vmatmul.bf16.gmra.mxu0 %v998
        %v1018 = vpop.f32.mrf.mxu0
        %v1019 = vadd.f32 0.0, %v1018
        %v1020 = vpop.f32.mrf.mxu0
        %v1021 = vadd.f32 0.0, %v1020
        %1022 = vmatmul.bf16.gmra.mxu0 %v1001
        %v1023 = vpop.f32.mrf.mxu0
        %v1024 = vadd.f32 0.0, %v1023
        %v1025 = vpop.f32.mrf.mxu0
        %v1026 = vadd.f32 0.0, %v1025
        %1027 = vdwg.mxu0
        %v1032 = vunpack.c.l.b16 %v778
        %v1033 = vunpack.c.l.b16 %v779
        %v1034 = vunpack.c.l.b16 %v780
        %v1035 = vunpack.c.l.b16 %v781
        %v1036 = vpack.c.b16 %v1033, %v1032
        %v1037 = vpack.c.b16 %v1035, %v1034
        %v1039 = vsel %vm673, %v776, 0
        %v1042 = vsel %vm673, %v777, 0
        %v1045 = vsel %vm673, %v1036, 0
        %v1048 = vsel %vm673, %v1037, 0
        %1050 = vmatpush.bf16.xpose.msra.mxu0 0
        %1051 = vmatpush.bf16.xpose.msra.mxu0 0
        %1052 = vmatpush.bf16.xpose.msra.mxu0 0
        %1053 = vmatpush.bf16.xpose.msra.mxu0 0
        %1054 = vmatpush.bf16.xpose.msra.mxu0 0
        %1055 = vmatpush.bf16.xpose.msra.mxu0 0
        %1056 = vmatpush.bf16.xpose.msra.mxu0 %v1048
        %1057 = vmatpush.bf16.xpose.msra.mxu0 %v1045
        %1058 = vmatmul.bf16.gmra.mxu0 %v1039
        %v1059 = vpop.f32.mrf.mxu0
        %v1060 = vadd.f32 %v1019, %v1059
        %v1061 = vpop.f32.mrf.mxu0
        %v1062 = vadd.f32 %v1021, %v1061
        %1063 = vmatmul.bf16.gmra.mxu0 %v1042
        %v1064 = vpop.f32.mrf.mxu0
        %v1065 = vadd.f32 %v1024, %v1064
        %v1066 = vpop.f32.mrf.mxu0
        %v1067 = vadd.f32 %v1026, %v1066
        %1068 = vdwg.mxu0
        %v1069 = vmax.f32 %v1060, 0.0
        %v1070 = vmax.f32 %v1062, 0.0
        %v1071 = vmax.f32 %v1065, 0.0
        %v1072 = vmax.f32 %v1067, 0.0
        %v1073 = vadd.f32 %v1069, %v559
        %v1074 = vadd.f32 %v1070, %v560
        %v1075 = vadd.f32 %v1071, %v561
        %v1076 = vadd.f32 %v1072, %v562
        %v1077 = vld [vmem:[%s5] sm:$0x1]
        %v1078 = vld [vmem:[#allocation2] sm:$0x1]
        %v1079 = vsel %vm580, %v1073, 0.0
        %1080 = vadd.xlane.f32.xlu0 %v1079
        %v1081 = vpop.xlane.xlu0 %1080
        %v1082 = vsel %vm580, %v1074, 0.0
        %1083 = vadd.xlane.f32.xlu0 %v1082
        %v1084 = vpop.xlane.xlu0 %1083
        %v1085 = vsel %vm580, %v1075, 0.0
        %1086 = vadd.xlane.f32.xlu0 %v1085
        %v1087 = vpop.xlane.xlu0 %1086
        %v1088 = vsel %vm580, %v1076, 0.0
        %1089 = vadd.xlane.f32.xlu0 %v1088
        %v1090 = vpop.xlane.xlu0 %1089
        %v1091 = vrcp.pop 32.0
        %v1092 = vmul.f32 32.0, %v1091
        %v1093 = vsub.f32 1.0, %v1092
        %v1094 = vmul.f32 %v1091, %v1093
        %v1095 = vadd.f32 %v1091, %v1094
        %vm1096 = vweird.f32 %v1091
        %v1097 = vsel %vm1096, %v1091, %v1095
        %v1098 = vmul.f32 %v1081, %v1097
        %v1099 = vmul.f32 %v1084, %v1097
        %v1100 = vmul.f32 %v1087, %v1097
        %v1101 = vmul.f32 %v1090, %v1097
        %v1102 = vsub.f32 %v1073, %v1098
        %v1103 = vsub.f32 %v1074, %v1099
        %v1104 = vsub.f32 %v1075, %v1100
        %v1105 = vsub.f32 %v1076, %v1101
        %v1106 = vmul.f32 %v1102, %v1102
        %v1107 = vmul.f32 %v1103, %v1103
        %v1108 = vmul.f32 %v1104, %v1104
        %v1109 = vmul.f32 %v1105, %v1105
        %v1110 = vsel %vm580, %v1106, 0.0
        %1111 = vadd.xlane.f32.xlu0 %v1110
        %v1112 = vpop.xlane.xlu0 %1111
        %v1113 = vsel %vm580, %v1107, 0.0
        %1114 = vadd.xlane.f32.xlu0 %v1113
        %v1115 = vpop.xlane.xlu0 %1114
        %v1116 = vsel %vm580, %v1108, 0.0
        %1117 = vadd.xlane.f32.xlu0 %v1116
        %v1118 = vpop.xlane.xlu0 %1117
        %v1119 = vsel %vm580, %v1109, 0.0
        %1120 = vadd.xlane.f32.xlu0 %v1119
        %v1121 = vpop.xlane.xlu0 %1120
        %v1122 = vmul.f32 %v1112, %v1097
        %v1123 = vmul.f32 %v1115, %v1097
        %v1124 = vmul.f32 %v1118, %v1097
        %v1125 = vmul.f32 %v1121, %v1097
        %v1126 = vadd.f32 %v1122, 1e-06
        %v1127 = vadd.f32 %v1123, 1e-06
        %v1128 = vadd.f32 %v1124, 1e-06
        %v1129 = vadd.f32 %v1125, 1e-06
        %v1130 = vrsqrt.pop %v1126
        %v1131 = vmul.f32 %v1130, %v1126
        %v1132 = vmul.f32 %v1131, %v1130
        %v1133 = vmul.f32 0.5, %v1132
        %v1134 = vsub.f32 1.5, %v1133
        %v1135 = vmul.f32 %v1130, %v1134
        %vm1136 = vweird.f32 %v1126
        %vm1137 = vweird.f32 %v1130
        %vm1138 = vmor %vm1136, %vm1137
        %v1139 = vsel %vm1138, %v1130, %v1135
        %v1140 = vrsqrt.pop %v1127
        %v1141 = vmul.f32 %v1140, %v1127
        %v1142 = vmul.f32 %v1141, %v1140
        %v1143 = vmul.f32 0.5, %v1142
        %v1144 = vsub.f32 1.5, %v1143
        %v1145 = vmul.f32 %v1140, %v1144
        %vm1146 = vweird.f32 %v1127
        %vm1147 = vweird.f32 %v1140
        %vm1148 = vmor %vm1146, %vm1147
        %v1149 = vsel %vm1148, %v1140, %v1145
        %v1150 = vrsqrt.pop %v1128
        %v1151 = vmul.f32 %v1150, %v1128
        %v1152 = vmul.f32 %v1151, %v1150
        %v1153 = vmul.f32 0.5, %v1152
        %v1154 = vsub.f32 1.5, %v1153
        %v1155 = vmul.f32 %v1150, %v1154
        %vm1156 = vweird.f32 %v1128
        %vm1157 = vweird.f32 %v1150
        %vm1158 = vmor %vm1156, %vm1157
        %v1159 = vsel %vm1158, %v1150, %v1155
        %v1160 = vrsqrt.pop %v1129
        %v1161 = vmul.f32 %v1160, %v1129
        %v1162 = vmul.f32 %v1161, %v1160
        %v1163 = vmul.f32 0.5, %v1162
        %v1164 = vsub.f32 1.5, %v1163
        %v1165 = vmul.f32 %v1160, %v1164
        %vm1166 = vweird.f32 %v1129
        %vm1167 = vweird.f32 %v1160
        %vm1168 = vmor %vm1166, %vm1167
        %v1169 = vsel %vm1168, %v1160, %v1165
        %v1170 = vmul.f32 %v1102, %v1139
        %v1171 = vmul.f32 %v1103, %v1149
        %v1172 = vmul.f32 %v1104, %v1159
        %v1173 = vmul.f32 %v1105, %v1169
        %v1175 = vperm.slane %v1077, 0
        %v1177 = vmul.f32 %v1170, %v1175
        %v1178 = vmul.f32 %v1171, %v1175
        %v1179 = vmul.f32 %v1172, %v1175
        %v1180 = vmul.f32 %v1173, %v1175
        %v1182 = vperm.slane %v1078, 0
        %v1184 = vadd.f32 %v1177, %v1182
        %v1185 = vadd.f32 %v1178, %v1182
        %v1186 = vadd.f32 %v1179, %v1182
        %v1187 = vadd.f32 %v1180, %v1182
        %v1188 = vpack.c.bf16 %v1184, %v1184
        %v1189 = vpack.c.bf16 %v1185, %v1185
        %v1190 = vpack.c.bf16 %v1186, %v1186
        %v1191 = vpack.c.bf16 %v1187, %v1187
        %v1192 = vld [vmem:[%s7] sm:$0xf]
        %v1193 = vld [vmem:[%s7 + $0x4] sm:$0xf]
        %v1194 = vld [vmem:[%s7 + $0x8] sm:$0xf]
        %v1195 = vld [vmem:[%s7 + $0xc] sm:$0xf]
        %v1196 = vld [vmem:[%s7 + $0x10] sm:$0xf]
        %v1197 = vld [vmem:[%s7 + $0x14] sm:$0xf]
        %v1198 = vld [vmem:[%s7 + $0x18] sm:$0xf]
        %v1199 = vld [vmem:[%s7 + $0x1c] sm:$0xf]
        %v1200 = vld [vmem:[#allocation5] sm:$0x1]
        %v1201 = vld [vmem:[#allocation7] sm:$0xf]
        %v1202 = vld [vmem:[#allocation7 + $0x4] sm:$0xf]
        %v1203 = vld [vmem:[#allocation7 + $0x8] sm:$0xf]
        %v1204 = vld [vmem:[#allocation7 + $0xc] sm:$0xf]
        %v1205 = vld [vmem:[#allocation8] sm:$0x1]
        %v1206 = vld [vmem:[%s11] sm:$0xf]
        %v1207 = vld [vmem:[%s12] sm:$0xf]
        %v1208 = vld [vmem:[%s13] sm:$0x1]
        %v1209 = vld [vmem:[%s14] sm:$0x1]
        %v1211 = vperm.slane %v1200, 0
        %v1221 = vunpack.c.l.b16 %v1192
        %v1222 = vunpack.c.l.b16 %v1193
        %v1223 = vunpack.c.l.b16 %v1194
        %v1224 = vunpack.c.l.b16 %v1195
        %v1225 = vunpack.c.l.b16 %v1196
        %v1226 = vunpack.c.l.b16 %v1197
        %v1227 = vunpack.c.l.b16 %v1198
        %v1228 = vunpack.c.l.b16 %v1199
        %v1229 = vpack.c.b16 %v1222, %v1221
        %v1230 = vpack.c.b16 %v1224, %v1223
        %v1231 = vpack.c.b16 %v1226, %v1225
        %v1232 = vpack.c.b16 %v1228, %v1227
        %v1234 = vsel %vm580, %v1188, 0
        %v1237 = vsel %vm580, %v1229, 0
        %v1240 = vsel %vm580, %v1230, 0
        %v1243 = vsel %vm580, %v1231, 0
        %v1246 = vsel %vm580, %v1232, 0
        %1248 = vmatpush.bf16.xpose.msra.mxu0 0
        %1249 = vmatpush.bf16.xpose.msra.mxu0 0
        %1250 = vmatpush.bf16.xpose.msra.mxu0 0
        %1251 = vmatpush.bf16.xpose.msra.mxu0 0
        %1252 = vmatpush.bf16.xpose.msra.mxu0 %v1246
        %1253 = vmatpush.bf16.xpose.msra.mxu0 %v1243
        %1254 = vmatpush.bf16.xpose.msra.mxu0 %v1240
        %1255 = vmatpush.bf16.xpose.msra.mxu0 %v1237
        %1256 = vmatmul.bf16.gmra.mxu0 %v1234
        %v1257 = vpop.f32.mrf.mxu0
        %v1258 = vadd.f32 %v1211, %v1257
        %v1259 = vpop.f32.mrf.mxu0
        %1260 = vdwg.mxu0
        %vm1261 = vcmask 523264
        %v1262 = vsel %vm1261, %v1258, 0.0
        %1263 = vadd.xlane.f32.xlu0 %v1262
        %v1264 = vpop.xlane.xlu0 %1263
        %v1265 = vrcp.pop 64.0
        %v1266 = vmul.f32 64.0, %v1265
        %v1267 = vsub.f32 1.0, %v1266
        %v1268 = vmul.f32 %v1265, %v1267
        %v1269 = vadd.f32 %v1265, %v1268
        %vm1270 = vweird.f32 %v1265
        %v1271 = vsel %vm1270, %v1265, %v1269
        %v1272 = vmul.f32 %v1264, %v1271
        %v1273 = vsub.f32 %v1258, %v1272
        %v1274 = vmul.f32 %v1273, %v1273
        %v1275 = vsel %vm1261, %v1274, 0.0
        %1276 = vadd.xlane.f32.xlu0 %v1275
        %v1277 = vpop.xlane.xlu0 %1276
        %v1278 = vmul.f32 %v1277, %v1271
        %v1279 = vadd.f32 %v1278, 1e-06
        %v1280 = vrsqrt.pop %v1279
        %v1281 = vmul.f32 %v1280, %v1279
        %v1282 = vmul.f32 %v1281, %v1280
        %v1283 = vmul.f32 0.5, %v1282
        %v1284 = vsub.f32 1.5, %v1283
        %v1285 = vmul.f32 %v1280, %v1284
        %vm1286 = vweird.f32 %v1279
        %vm1287 = vweird.f32 %v1280
        %vm1288 = vmor %vm1286, %vm1287
        %v1289 = vsel %vm1288, %v1280, %v1285
        %v1290 = vmul.f32 %v1273, %v1289
        %v1291 = vperm.slane %v1206, 0
        %v1292 = vmul.f32 %v1290, %v1291
        %v1293 = vperm.slane %v1207, 0
        %v1294 = vadd.f32 %v1292, %v1293
        %v1295 = vmax.f32 %v1294, 0.0
        %v1296 = vpack.c.bf16 %v1295, %v1295
        %v1298 = vperm.slane %v1205, 0
        %v1304 = vunpack.c.l.b16 %v1201
        %v1305 = vunpack.c.l.b16 %v1202
        %v1306 = vunpack.c.l.b16 %v1203
        %v1307 = vunpack.c.l.b16 %v1204
        %v1308 = vpack.c.b16 %v1305, %v1304
        %v1309 = vpack.c.b16 %v1307, %v1306
        %v1311 = vsel %vm1261, %v1296, 0
        %v1314 = vsel %vm1261, %v1308, 0
        %v1317 = vsel %vm1261, %v1309, 0
        %1319 = vmatpush.bf16.xpose.msra.mxu0 0
        %1320 = vmatpush.bf16.xpose.msra.mxu0 0
        %1321 = vmatpush.bf16.xpose.msra.mxu0 0
        %1322 = vmatpush.bf16.xpose.msra.mxu0 0
        %1323 = vmatpush.bf16.xpose.msra.mxu0 0
        %1324 = vmatpush.bf16.xpose.msra.mxu0 0
        %1325 = vmatpush.bf16.xpose.msra.mxu0 %v1317
        %1326 = vmatpush.bf16.xpose.msra.mxu0 %v1314
        %1327 = vmatmul.bf16.gmra.mxu0 %v1311
        %v1328 = vpop.f32.mrf.mxu0
        %v1329 = vadd.f32 %v1298, %v1328
        %v1330 = vpop.f32.mrf.mxu0
        %1331 = vdwg.mxu0
        %v1332 = vadd.f32 %v1329, %v1184
        %v1333 = vsel %vm580, %v1332, 0.0
        %1334 = vadd.xlane.f32.xlu0 %v1333
        %v1335 = vpop.xlane.xlu0 %1334
        %v1336 = vmul.f32 %v1335, %v1097
        %v1337 = vsub.f32 %v1332, %v1336
        %v1338 = vmul.f32 %v1337, %v1337
        %v1339 = vsel %vm580, %v1338, 0.0
        %1340 = vadd.xlane.f32.xlu0 %v1339
        %v1341 = vpop.xlane.xlu0 %1340
        %v1342 = vmul.f32 %v1341, %v1097
        %v1343 = vadd.f32 %v1342, 1e-06
        %v1344 = vrsqrt.pop %v1343
        %v1345 = vmul.f32 %v1344, %v1343
        %v1346 = vmul.f32 %v1345, %v1344
        %v1347 = vmul.f32 0.5, %v1346
        %v1348 = vsub.f32 1.5, %v1347
        %v1349 = vmul.f32 %v1344, %v1348
        %vm1350 = vweird.f32 %v1343
        %vm1351 = vweird.f32 %v1344
        %vm1352 = vmor %vm1350, %vm1351
        %v1353 = vsel %vm1352, %v1344, %v1349
        %v1354 = vmul.f32 %v1337, %v1353
        %v1356 = vperm.slane %v1208, 0
        %v1358 = vmul.f32 %v1354, %v1356
        %v1360 = vperm.slane %v1209, 0
        %v1362 = vadd.f32 %v1358, %v1360
        %1363 = vst.msk [vmem:[%s548] sm:$0xff] %vm580, %v1362
        %v1365 = vsel %vm580, %v1189, 0
        %1367 = vmatpush.bf16.xpose.msra.mxu0 0
        %1368 = vmatpush.bf16.xpose.msra.mxu0 0
        %1369 = vmatpush.bf16.xpose.msra.mxu0 0
        %1370 = vmatpush.bf16.xpose.msra.mxu0 0
        %1371 = vmatpush.bf16.xpose.msra.mxu0 %v1246
        %1372 = vmatpush.bf16.xpose.msra.mxu0 %v1243
        %1373 = vmatpush.bf16.xpose.msra.mxu0 %v1240
        %1374 = vmatpush.bf16.xpose.msra.mxu0 %v1237
        %1375 = vmatmul.bf16.gmra.mxu0 %v1365
        %v1376 = vpop.f32.mrf.mxu0
        %v1377 = vadd.f32 %v1211, %v1376
        %v1378 = vpop.f32.mrf.mxu0
        %1379 = vdwg.mxu0
        %v1380 = vsel %vm1261, %v1377, 0.0
        %1381 = vadd.xlane.f32.xlu0 %v1380
        %v1382 = vpop.xlane.xlu0 %1381
        %v1383 = vmul.f32 %v1382, %v1271
        %v1384 = vsub.f32 %v1377, %v1383
        %v1385 = vmul.f32 %v1384, %v1384
        %v1386 = vsel %vm1261, %v1385, 0.0
        %1387 = vadd.xlane.f32.xlu0 %v1386
        %v1388 = vpop.xlane.xlu0 %1387
        %v1389 = vmul.f32 %v1388, %v1271
        %v1390 = vadd.f32 %v1389, 1e-06
        %v1391 = vrsqrt.pop %v1390
        %v1392 = vmul.f32 %v1391, %v1390
        %v1393 = vmul.f32 %v1392, %v1391
        %v1394 = vmul.f32 0.5, %v1393
        %v1395 = vsub.f32 1.5, %v1394
        %v1396 = vmul.f32 %v1391, %v1395
        %vm1397 = vweird.f32 %v1390
        %vm1398 = vweird.f32 %v1391
        %vm1399 = vmor %vm1397, %vm1398
        %v1400 = vsel %vm1399, %v1391, %v1396
        %v1401 = vmul.f32 %v1384, %v1400
        %v1402 = vperm.slane %v1206, 1
        %v1403 = vmul.f32 %v1401, %v1402
        %v1404 = vperm.slane %v1207, 1
        %v1405 = vadd.f32 %v1403, %v1404
        %v1406 = vmax.f32 %v1405, 0.0
        %v1407 = vpack.c.bf16 %v1406, %v1406
        %v1409 = vsel %vm1261, %v1407, 0
        %1411 = vmatpush.bf16.xpose.msra.mxu0 0
        %1412 = vmatpush.bf16.xpose.msra.mxu0 0
        %1413 = vmatpush.bf16.xpose.msra.mxu0 0
        %1414 = vmatpush.bf16.xpose.msra.mxu0 0
        %1415 = vmatpush.bf16.xpose.msra.mxu0 0
        %1416 = vmatpush.bf16.xpose.msra.mxu0 0
        %1417 = vmatpush.bf16.xpose.msra.mxu0 %v1317
        %1418 = vmatpush.bf16.xpose.msra.mxu0 %v1314
        %1419 = vmatmul.bf16.gmra.mxu0 %v1409
        %v1420 = vpop.f32.mrf.mxu0
        %v1421 = vadd.f32 %v1298, %v1420
        %v1422 = vpop.f32.mrf.mxu0
        %1423 = vdwg.mxu0
        %v1424 = vadd.f32 %v1421, %v1185
        %v1425 = vsel %vm580, %v1424, 0.0
        %1426 = vadd.xlane.f32.xlu0 %v1425
        %v1427 = vpop.xlane.xlu0 %1426
        %v1428 = vmul.f32 %v1427, %v1097
        %v1429 = vsub.f32 %v1424, %v1428
        %v1430 = vmul.f32 %v1429, %v1429
        %v1431 = vsel %vm580, %v1430, 0.0
        %1432 = vadd.xlane.f32.xlu0 %v1431
        %v1433 = vpop.xlane.xlu0 %1432
        %v1434 = vmul.f32 %v1433, %v1097
        %v1435 = vadd.f32 %v1434, 1e-06
        %v1436 = vrsqrt.pop %v1435
        %v1437 = vmul.f32 %v1436, %v1435
        %v1438 = vmul.f32 %v1437, %v1436
        %v1439 = vmul.f32 0.5, %v1438
        %v1440 = vsub.f32 1.5, %v1439
        %v1441 = vmul.f32 %v1436, %v1440
        %vm1442 = vweird.f32 %v1435
        %vm1443 = vweird.f32 %v1436
        %vm1444 = vmor %vm1442, %vm1443
        %v1445 = vsel %vm1444, %v1436, %v1441
        %v1446 = vmul.f32 %v1429, %v1445
        %v1447 = vmul.f32 %v1446, %v1356
        %v1448 = vadd.f32 %v1447, %v1360
        %1449 = vst.msk [vmem:[%s548 + $0x8] sm:$0xff] %vm580, %v1448
        %v1451 = vsel %vm580, %v1190, 0
        %1453 = vmatpush.bf16.xpose.msra.mxu0 0
        %1454 = vmatpush.bf16.xpose.msra.mxu0 0
        %1455 = vmatpush.bf16.xpose.msra.mxu0 0
        %1456 = vmatpush.bf16.xpose.msra.mxu0 0
        %1457 = vmatpush.bf16.xpose.msra.mxu0 %v1246
        %1458 = vmatpush.bf16.xpose.msra.mxu0 %v1243
        %1459 = vmatpush.bf16.xpose.msra.mxu0 %v1240
        %1460 = vmatpush.bf16.xpose.msra.mxu0 %v1237
        %1461 = vmatmul.bf16.gmra.mxu0 %v1451
        %v1462 = vpop.f32.mrf.mxu0
        %v1463 = vadd.f32 %v1211, %v1462
        %v1464 = vpop.f32.mrf.mxu0
        %1465 = vdwg.mxu0
        %v1466 = vsel %vm1261, %v1463, 0.0
        %1467 = vadd.xlane.f32.xlu0 %v1466
        %v1468 = vpop.xlane.xlu0 %1467
        %v1469 = vmul.f32 %v1468, %v1271
        %v1470 = vsub.f32 %v1463, %v1469
        %v1471 = vmul.f32 %v1470, %v1470
        %v1472 = vsel %vm1261, %v1471, 0.0
        %1473 = vadd.xlane.f32.xlu0 %v1472
        %v1474 = vpop.xlane.xlu0 %1473
        %v1475 = vmul.f32 %v1474, %v1271
        %v1476 = vadd.f32 %v1475, 1e-06
        %v1477 = vrsqrt.pop %v1476
        %v1478 = vmul.f32 %v1477, %v1476
        %v1479 = vmul.f32 %v1478, %v1477
        %v1480 = vmul.f32 0.5, %v1479
        %v1481 = vsub.f32 1.5, %v1480
        %v1482 = vmul.f32 %v1477, %v1481
        %vm1483 = vweird.f32 %v1476
        %vm1484 = vweird.f32 %v1477
        %vm1485 = vmor %vm1483, %vm1484
        %v1486 = vsel %vm1485, %v1477, %v1482
        %v1487 = vmul.f32 %v1470, %v1486
        %v1488 = vperm.slane %v1206, 2
        %v1489 = vmul.f32 %v1487, %v1488
        %v1490 = vperm.slane %v1207, 2
        %v1491 = vadd.f32 %v1489, %v1490
        %v1492 = vmax.f32 %v1491, 0.0
        %v1493 = vpack.c.bf16 %v1492, %v1492
        %v1495 = vsel %vm1261, %v1493, 0
        %1497 = vmatpush.bf16.xpose.msra.mxu0 0
        %1498 = vmatpush.bf16.xpose.msra.mxu0 0
        %1499 = vmatpush.bf16.xpose.msra.mxu0 0
        %1500 = vmatpush.bf16.xpose.msra.mxu0 0
        %1501 = vmatpush.bf16.xpose.msra.mxu0 0
        %1502 = vmatpush.bf16.xpose.msra.mxu0 0
        %1503 = vmatpush.bf16.xpose.msra.mxu0 %v1317
        %1504 = vmatpush.bf16.xpose.msra.mxu0 %v1314
        %1505 = vmatmul.bf16.gmra.mxu0 %v1495
        %v1506 = vpop.f32.mrf.mxu0
        %v1507 = vadd.f32 %v1298, %v1506
        %v1508 = vpop.f32.mrf.mxu0
        %1509 = vdwg.mxu0
        %v1510 = vadd.f32 %v1507, %v1186
        %v1511 = vsel %vm580, %v1510, 0.0
        %1512 = vadd.xlane.f32.xlu0 %v1511
        %v1513 = vpop.xlane.xlu0 %1512
        %v1514 = vmul.f32 %v1513, %v1097
        %v1515 = vsub.f32 %v1510, %v1514
        %v1516 = vmul.f32 %v1515, %v1515
        %v1517 = vsel %vm580, %v1516, 0.0
        %1518 = vadd.xlane.f32.xlu0 %v1517
        %v1519 = vpop.xlane.xlu0 %1518
        %v1520 = vmul.f32 %v1519, %v1097
        %v1521 = vadd.f32 %v1520, 1e-06
        %v1522 = vrsqrt.pop %v1521
        %v1523 = vmul.f32 %v1522, %v1521
        %v1524 = vmul.f32 %v1523, %v1522
        %v1525 = vmul.f32 0.5, %v1524
        %v1526 = vsub.f32 1.5, %v1525
        %v1527 = vmul.f32 %v1522, %v1526
        %vm1528 = vweird.f32 %v1521
        %vm1529 = vweird.f32 %v1522
        %vm1530 = vmor %vm1528, %vm1529
        %v1531 = vsel %vm1530, %v1522, %v1527
        %v1532 = vmul.f32 %v1515, %v1531
        %v1533 = vmul.f32 %v1532, %v1356
        %v1534 = vadd.f32 %v1533, %v1360
        %1535 = vst.msk [vmem:[%s548 + $0x10] sm:$0xff] %vm580, %v1534
        %v1537 = vsel %vm580, %v1191, 0
        %1539 = vmatpush.bf16.xpose.msra.mxu0 0
        %1540 = vmatpush.bf16.xpose.msra.mxu0 0
        %1541 = vmatpush.bf16.xpose.msra.mxu0 0
        %1542 = vmatpush.bf16.xpose.msra.mxu0 0
        %1543 = vmatpush.bf16.xpose.msra.mxu0 %v1246
        %1544 = vmatpush.bf16.xpose.msra.mxu0 %v1243
        %1545 = vmatpush.bf16.xpose.msra.mxu0 %v1240
        %1546 = vmatpush.bf16.xpose.msra.mxu0 %v1237
        %1547 = vmatmul.bf16.gmra.mxu0 %v1537
        %v1548 = vpop.f32.mrf.mxu0
        %v1549 = vadd.f32 %v1211, %v1548
        %v1550 = vpop.f32.mrf.mxu0
        %1551 = vdwg.mxu0
        %v1552 = vsel %vm1261, %v1549, 0.0
        %1553 = vadd.xlane.f32.xlu0 %v1552
        %v1554 = vpop.xlane.xlu0 %1553
        %v1555 = vmul.f32 %v1554, %v1271
        %v1556 = vsub.f32 %v1549, %v1555
        %v1557 = vmul.f32 %v1556, %v1556
        %v1558 = vsel %vm1261, %v1557, 0.0
        %1559 = vadd.xlane.f32.xlu0 %v1558
        %v1560 = vpop.xlane.xlu0 %1559
        %v1561 = vmul.f32 %v1560, %v1271
        %v1562 = vadd.f32 %v1561, 1e-06
        %v1563 = vrsqrt.pop %v1562
        %v1564 = vmul.f32 %v1563, %v1562
        %v1565 = vmul.f32 %v1564, %v1563
        %v1566 = vmul.f32 0.5, %v1565
        %v1567 = vsub.f32 1.5, %v1566
        %v1568 = vmul.f32 %v1563, %v1567
        %vm1569 = vweird.f32 %v1562
        %vm1570 = vweird.f32 %v1563
        %vm1571 = vmor %vm1569, %vm1570
        %v1572 = vsel %vm1571, %v1563, %v1568
        %v1573 = vmul.f32 %v1556, %v1572
        %v1574 = vperm.slane %v1206, 3
        %v1575 = vmul.f32 %v1573, %v1574
        %v1576 = vperm.slane %v1207, 3
        %v1577 = vadd.f32 %v1575, %v1576
        %v1578 = vmax.f32 %v1577, 0.0
        %v1579 = vpack.c.bf16 %v1578, %v1578
        %v1581 = vsel %vm1261, %v1579, 0
        %1583 = vmatpush.bf16.xpose.msra.mxu0 0
        %1584 = vmatpush.bf16.xpose.msra.mxu0 0
        %1585 = vmatpush.bf16.xpose.msra.mxu0 0
        %1586 = vmatpush.bf16.xpose.msra.mxu0 0
        %1587 = vmatpush.bf16.xpose.msra.mxu0 0
        %1588 = vmatpush.bf16.xpose.msra.mxu0 0
        %1589 = vmatpush.bf16.xpose.msra.mxu0 %v1317
        %1590 = vmatpush.bf16.xpose.msra.mxu0 %v1314
        %1591 = vmatmul.bf16.gmra.mxu0 %v1581
        %v1592 = vpop.f32.mrf.mxu0
        %v1593 = vadd.f32 %v1298, %v1592
        %v1594 = vpop.f32.mrf.mxu0
        %1595 = vdwg.mxu0
        %v1596 = vadd.f32 %v1593, %v1187
        %v1597 = vsel %vm580, %v1596, 0.0
        %1598 = vadd.xlane.f32.xlu0 %v1597
        %v1599 = vpop.xlane.xlu0 %1598
        %v1600 = vmul.f32 %v1599, %v1097
        %v1601 = vsub.f32 %v1596, %v1600
        %v1602 = vmul.f32 %v1601, %v1601
        %v1603 = vsel %vm580, %v1602, 0.0
        %1604 = vadd.xlane.f32.xlu0 %v1603
        %v1605 = vpop.xlane.xlu0 %1604
        %v1606 = vmul.f32 %v1605, %v1097
        %v1607 = vadd.f32 %v1606, 1e-06
        %v1608 = vrsqrt.pop %v1607
        %v1609 = vmul.f32 %v1608, %v1607
        %v1610 = vmul.f32 %v1609, %v1608
        %v1611 = vmul.f32 0.5, %v1610
        %v1612 = vsub.f32 1.5, %v1611
        %v1613 = vmul.f32 %v1608, %v1612
        %vm1614 = vweird.f32 %v1607
        %vm1615 = vweird.f32 %v1608
        %vm1616 = vmor %vm1614, %vm1615
        %v1617 = vsel %vm1616, %v1608, %v1613
        %v1618 = vmul.f32 %v1601, %v1617
        %v1619 = vmul.f32 %v1618, %v1356
        %v1620 = vadd.f32 %v1619, %v1360
        %1621 = vst.msk [vmem:[%s548 + $0x18] sm:$0xff] %vm580, %v1620
        %s1622 = sand.u32 %s360, 1
        %s1623 = scalar_lea.sflag [#allocation4], %s1622
        %s1624 = sand.u32 %s360, 1
        %s1625 = smul.addr %s1624, 32
        %s1626 = scalar_lea.vmem [#allocation10], %s1625
        // Predicated region
        $region97: #{tpu_custom_call.1} parent=79 // pred_check
          %p1627 = pneg %p370
        $region98: #{tpu_custom_call.1} parent=79 // pred_check_branch
          %1629 = sbr.rel (%p1627) target = $region100
        $region99: #{tpu_custom_call.1} parent=79 // pred_region
          %1631 = vsyncadd %s1623, 0
          %s1632 = smul.addr %s32, 4
          %s1633 = smul.addr %s1632, 8
          %s1634 = scalar_lea.hbm %s15, %s1633
          %s1635 = sshll.u32 %s1626, 4
          %s1636 = int_to_ptr.vmem [resolvable:$true] %s1635
          %s1637 = sshll.u32 %s1634, 4
          %s1638 = int_to_ptr.hbm [resolvable:$true] %s1637
          %1643 = dma.vmem_to_hbm [thread:$0]  %s1636, 512, %s1638, %s1623, 128, 128, 8
        $region100: #{tpu_custom_call.1} parent=79 // pred_fallthru
          _
      $region80: #{tpu_custom_call.1} parent=5 // pred_fallthru
        _
      %p1644 = scmp.le.s32.totalorder 2, %s27
      // Predicated region
      $region101: #{tpu_custom_call.1} parent=5 // pred_check
        %p1645 = pneg %p1644
      $region102: #{tpu_custom_call.1} parent=5 // pred_check_branch
        %1647 = sbr.rel (%p1645) target = $region104
      $region103: #{tpu_custom_call.1} parent=5 // pred_region
        %s1648 = ssub.s32 %s27, 2
        // Predicated region
        $region105: #{tpu_custom_call.1} parent=103 // pred_check
          %p1649 = pneg %p376
        $region106: #{tpu_custom_call.1} parent=103 // pred_check_branch
          %1651 = sbr.rel (%p1649) target = $region108
        $region107: #{tpu_custom_call.1} parent=103 // pred_region
          %s1652 = sand.u32 %s361, 1
          %s1653 = scalar_lea.sflag [#allocation4], %s1652
          %s1654 = sand.u32 %s361, 1
          %s1655 = smul.addr %s1654, 32
          %s1656 = scalar_lea.vmem [#allocation10], %s1655
          %1658 = dma.done %s1653, 512
        $region108: #{tpu_custom_call.1} parent=103 // pred_fallthru
          _
      $region104: #{tpu_custom_call.1} parent=5 // pred_fallthru
        _
    $region6: #{tpu_custom_call.1} parent=1 // loop_footer
      %s31 = sadd.s32 1, %s27
    $region7: #{tpu_custom_call.1} parent=1 // loop_footer_branch
      %26 = sbr.rel target = $region3
    $region8: #{tpu_custom_call.1} parent=1 // loop_exit
      _
    %1659 = vsyncpa [#allocation3], 1
    %s1660 = scalar_lea.sflag [#allocation3], 1
    %1661 = vsyncpa %s1660, 1
    %1662 = vsyncpa [#allocation6], 1
    %1663 = vsyncpa [#allocation9], 1
    %1664 = vsyncpa [#allocation4], 1
    %s1665 = scalar_lea.sflag [#allocation4], 1
    %1666 = vsyncpa %s1665, 1

</llo_original>
